<compile_context>
chip_gen: v5e
topology: v5e:2x2
jax: 0.10.0
libtpu: 0.0.40
codegen_flags: <defaults>
</compile_context>

<pallas_src>
import jax
import jax.numpy as jnp
from jax import lax
from jax.experimental import pallas as pl
from jax.experimental.pallas import tpu as pltpu


def _round_up(x, m):
    return ((x + m - 1) // m) * m


def _vmem_budget_bytes():
    """~85% of physical VMEM per TensorCore (headroom for compiler scratch)."""
    cap = None
    try:
        cap = getattr(pltpu.get_tpu_info(), "vmem_capacity_bytes", None)
    except Exception:
        cap = None
    if not cap:
        cap = 64 << 20  # conservative fallback: v7x physical per-TensorCore
    return int(cap * 0.85)


def _make_gather_kernel(nu_rows, ni_rows, chunk_u, chunk_i, exact):
    """Gather rows of two VMEM-resident tables via a chunked one-hot MXU dot."""
    nu_chunks = nu_rows // chunk_u
    ni_chunks = ni_rows // chunk_i

    def gather(ids, tab_ref, n_chunks, chunk):
        tb = ids.shape[0]
        E = tab_ref.shape[1]
        # HIGHEST keeps the f32 gather bit-exact (one-hot entries are exact in
        # bf16, so the multi-pass decomposition reproduces f32 rows exactly).
        # bf16 tables / exact=False -> single native bf16 MXU pass.
        precision = (lax.Precision.HIGHEST
                     if exact and tab_ref.dtype == jnp.float32 else None)

        def chunk_dot(base, rows):
            iota = base + lax.broadcasted_iota(jnp.int32, (tb, chunk), 1)
            onehot = (iota == ids).astype(rows.dtype)
            return jnp.dot(onehot, rows,
                           preferred_element_type=jnp.float32,
                           precision=precision)

        if n_chunks == 1:
            return chunk_dot(0, tab_ref[...])

        def body(c, acc):
            base = pl.multiple_of(c * chunk, chunk)
            return acc + chunk_dot(base, tab_ref[pl.ds(base, chunk), :])

        return lax.fori_loop(0, n_chunks, body,
                             jnp.zeros((tb, E), jnp.float32),
                             unroll=n_chunks <= 4)

    def kernel(uids_ref, iids_ref, utab_ref, itab_ref, uout_ref, iout_ref):
        uids = uids_ref[...]  # (tb, 1) int32
        iids = iids_ref[...]  # (tb, 1) int32
        uout_ref[...] = gather(uids, utab_ref, nu_chunks, chunk_u).astype(uout_ref.dtype)
        iout_ref[...] = gather(iids, itab_ref, ni_chunks, chunk_i).astype(iout_ref.dtype)

    return kernel


def bprmf_forward(user_ids, item_ids, user_table, item_table, *,
                  tb=None, row_chunk=None, exact=True, single_buffer_tables=True):
    """Pallas BPRMF.forward -> (user_e, item_e).

    Out-of-range ids are clamped (jnp.take-style); PyTorch nn.Embedding would
    raise on them instead.
    """
    B = int(user_ids.shape[0])
    n_user, E = user_table.shape
    n_item, E_i = item_table.shape
    assert E_i == E
    assert int(item_ids.shape[0]) == B
    dt_bytes = max(jnp.dtype(user_table.dtype).itemsize,
                   jnp.dtype(item_table.dtype).itemsize)

    vmem_budget = _vmem_budget_bytes()

    # --- batch tile: round to 8; split large batches so v7x's 2nd core works.
    if tb is None:
        tb = min(512, _round_up(B, 8))
        if B > 64 and pl.cdiv(B, tb) < 2:
            tb = _round_up(pl.cdiv(B, 2), 8)
    tb = max(8, _round_up(int(tb), 8))

    # --- table-row chunk: caps the one-hot temporary at tb*row_chunk.
    if row_chunk is None:
        row_chunk = 512
    row_chunk = max(8, _round_up(int(row_chunk), 8))
    chunk_u = min(row_chunk, _round_up(n_user, 8))
    chunk_i = min(row_chunk, _round_up(n_item, 8))
    nu_rows = _round_up(n_user, chunk_u)
    ni_rows = _round_up(n_item, chunk_i)

    # --- VMEM estimate: tables + id tiles + output tiles + one-hot temps + acc.
    def est_bytes(tb_, table_bufs):
        tables = table_bufs * (nu_rows + ni_rows) * E * dt_bytes
        ids = 2 * 2 * tb_ * 128 * 4                       # (tb,1) i32, lane-padded, dbl-buf
        outs = 2 * 2 * tb_ * max(E, 128) * dt_bytes       # double-buffered outputs
        onehot = 3 * tb_ * max(chunk_u, chunk_i) * 4      # iota + compare + one-hot
        accum = 2 * tb_ * max(E, 128) * 4
        return tables + ids + outs + onehot + accum + (2 << 20)

    shrink_bufs = 1 if single_buffer_tables else 2
    while tb > 8 and est_bytes(tb, shrink_bufs) > vmem_budget:
        tb = max(8, _round_up(tb // 2, 8))

    n_tiles = pl.cdiv(B, tb)
    Bp = n_tiles * tb

    # --- inputs: clamp ids, pad batch; pad table rows to a chunk multiple
    # (padded rows are zero and can never match a clamped id).
    uids = jnp.clip(user_ids.astype(jnp.int32), 0, n_user - 1)
    iids = jnp.clip(item_ids.astype(jnp.int32), 0, n_item - 1)
    if Bp != B:
        uids = jnp.pad(uids, (0, Bp - B))
        iids = jnp.pad(iids, (0, Bp - B))
    uids = uids.reshape(Bp, 1)
    iids = iids.reshape(Bp, 1)

    utab = (user_table if nu_rows == n_user
            else jnp.pad(user_table, ((0, nu_rows - n_user), (0, 0))))
    itab = (item_table if ni_rows == n_item
            else jnp.pad(item_table, ((0, ni_rows - n_item), (0, 0))))

    kernel = _make_gather_kernel(nu_rows, ni_rows, chunk_u, chunk_i, exact)

    out_shape = (
        jax.ShapeDtypeStruct((Bp, E), user_table.dtype),
        jax.ShapeDtypeStruct((Bp, E), item_table.dtype),
    )

    def build(single_buf):
        tbl_kwargs = {"pipeline_mode": pl.Buffered(1)} if single_buf else {}
        grid_spec = pl.GridSpec(
            grid=(n_tiles,),
            in_specs=[
                pl.BlockSpec((tb, 1), lambda i: (i, 0)),               # user ids tile
                pl.BlockSpec((tb, 1), lambda i: (i, 0)),               # item ids tile
                pl.BlockSpec((nu_rows, E), lambda i: (0, 0), **tbl_kwargs),  # resident
                pl.BlockSpec((ni_rows, E), lambda i: (0, 0), **tbl_kwargs),  # resident
            ],
            out_specs=[
                pl.BlockSpec((tb, E), lambda i: (i, 0)),
                pl.BlockSpec((tb, E), lambda i: (i, 0)),
            ],
        )
        table_bufs = 1 if single_buf else 2
        vmem_limit = int(min(max(est_bytes(tb, table_bufs), 4 << 20), vmem_budget))
        return pl.pallas_call(
            kernel,
            grid_spec=grid_spec,
            out_shape=out_shape,
            compiler_params=pltpu.CompilerParams(
                dimension_semantics=("parallel",),  # batch tiles are independent
                vmem_limit_bytes=vmem_limit,
            ),
        )

    args = (uids, iids, utab, itab)
    if single_buffer_tables:
        try:
            user_e, item_e = jax.block_until_ready(build(True)(*args))
        except Exception:
            # pipeline_mode=pl.Buffered(1) unsupported on this JAX/path ->
            # fall back to the default (double-buffered) table spec.
            user_e, item_e = build(False)(*args)
    else:
        user_e, item_e = build(False)(*args)

    if Bp != B:
        user_e = user_e[:B]
        item_e = item_e[:B]
    return user_e, item_e


def xavier_normal(key, shape):
    # nn.Embedding weight [num_embeddings, embedding_dim]:
    # fan_in = embedding_dim, fan_out = num_embeddings, gain = 1.0.
    fan_out, fan_in = shape
    std = (2.0 / (fan_in + fan_out)) ** 0.5
    return std * jax.random.normal(key, shape, dtype=jnp.float32)


if __name__ == "__main__":
    # Small deterministic config (args.factor_num == embedding_size == 128).
    n_user, n_item, embedding_size = 64, 96, 128
    batch = 16

    key = jax.random.PRNGKey(0)
    k_u, k_i, k_uid, k_iid = jax.random.split(key, 4)

    user_table = xavier_normal(k_u, (n_user, embedding_size))
    item_table = xavier_normal(k_i, (n_item, embedding_size))

    user_ids = jax.random.randint(k_uid, (batch,), 0, n_user, dtype=jnp.int32)
    item_ids = jax.random.randint(k_iid, (batch,), 0, n_item, dtype=jnp.int32)

    # Reference (plain JAX gather == torch embedding lookup).
    ref_user_e = jnp.take(user_table, user_ids, axis=0)
    ref_item_e = jnp.take(item_table, item_ids, axis=0)

    # 1) Default path: single batch tile, single row chunk, exact f32 gather.
    user_e, item_e = bprmf_forward(user_ids, item_ids, user_table, item_table)
    jax.block_until_ready((user_e, item_e))
    assert user_e.shape == (batch, embedding_size) and user_e.dtype == jnp.float32
    assert item_e.shape == (batch, embedding_size) and item_e.dtype == jnp.float32
    assert jnp.allclose(user_e, ref_user_e)
    assert jnp.allclose(item_e, ref_item_e)

    # 2) Multi-tile + chunked-one-hot path (tb=8 -> 2 tiles; row_chunk=32 ->
    #    2 user chunks, 3 item chunks). Still bit-exact.
    user_e2, item_e2 = bprmf_forward(
        user_ids, item_ids, user_table, item_table, tb=8, row_chunk=32)
    jax.block_until_ready((user_e2, item_e2))
    assert jnp.allclose(user_e2, ref_user_e)
    assert jnp.allclose(item_e2, ref_item_e)

    # 3) Fast path (exact=False): single native bf16 MXU pass -> bf16-rounded
    #    rows, checked with a tolerance.
    user_e3, item_e3 = bprmf_forward(
        user_ids, item_ids, user_table, item_table, exact=False)
    jax.block_until_ready((user_e3, item_e3))
    assert jnp.allclose(user_e3, ref_user_e, rtol=1e-2, atol=1e-3)
    assert jnp.allclose(item_e3, ref_item_e, rtol=1e-2, atol=1e-3)

    print("KERNEL_OK")
</pallas_src>

<mosaic_0001>
module attributes {stable_mosaic.version = 11 : i64} {
  func.func @kernel(%arg0: i32, %arg1: memref<16x1xi32, #tpu.memory_space<vmem>>, %arg2: memref<16x1xi32, #tpu.memory_space<vmem>>, %arg3: memref<64x128xf32, #tpu.memory_space<vmem>>, %arg4: memref<96x128xf32, #tpu.memory_space<vmem>>, %arg5: memref<16x128xf32, #tpu.memory_space<vmem>>, %arg6: memref<16x128xf32, #tpu.memory_space<vmem>>) attributes {dimension_semantics = [#tpu.dimension_semantics<parallel>], iteration_bounds = array<i64: 1>, scalar_prefetch = 0 : i64, scratch_operands = 0 : i64, tpu.core_type = #tpu.core_type<tc>, window_params = [{transform_indices = @transform_0, window_bounds = array<i64: 16, 1>}, {transform_indices = @transform_1, window_bounds = array<i64: 16, 1>}, {pipeline_mode = #tpu.pipeline_mode<synchronous>, transform_indices = @transform_2, window_bounds = array<i64: 64, 128>}, {pipeline_mode = #tpu.pipeline_mode<synchronous>, transform_indices = @transform_3, window_bounds = array<i64: 96, 128>}, {transform_indices = @transform_4, window_bounds = array<i64: 16, 128>}, {transform_indices = @transform_5, window_bounds = array<i64: 16, 128>}]} {
    %c0 = arith.constant 0 : index
    %c0_0 = arith.constant 0 : index
    %0 = vector.load %arg1[%c0, %c0_0] : memref<16x1xi32, #tpu.memory_space<vmem>>, vector<16x1xi32>
    %c0_1 = arith.constant 0 : index
    %c0_2 = arith.constant 0 : index
    %1 = vector.load %arg2[%c0_1, %c0_2] : memref<16x1xi32, #tpu.memory_space<vmem>>, vector<16x1xi32>
    %c0_3 = arith.constant 0 : index
    %c0_4 = arith.constant 0 : index
    %2 = vector.load %arg3[%c0_3, %c0_4] : memref<64x128xf32, #tpu.memory_space<vmem>>, vector<64x128xf32>
    %3 = tpu.iota {dimensions = array<i32: 1>} : vector<16x64xi32>
    %c0_i32 = arith.constant 0 : i32
    %4 = vector.broadcast %c0_i32 : i32 to vector<16x64xi32>
    %5 = arith.addi %4, %3 : vector<16x64xi32>
    %6 = vector.broadcast %0 : vector<16x1xi32> to vector<16x64xi32>
    %7 = arith.cmpi eq, %5, %6 : vector<16x64xi32>
    %8 = arith.extui %7 : vector<16x64xi1> to vector<16x64xi32>
    %9 = arith.sitofp %8 : vector<16x64xi32> to vector<16x64xf32>
    %cst = arith.constant dense<0.000000e+00> : vector<16x128xf32>
    %10 = tpu.matmul %9, %2, %cst {dimension_numbers = #tpu.dot_dimension_numbers<[1], [0], [0], [1], [0, 0, 1, 1], [], []>, precision = #tpu.contract_precision<fp32>} : vector<16x64xf32>, vector<64x128xf32>, vector<16x128xf32> -> vector<16x128xf32>
    %c0_5 = arith.constant 0 : index
    %c0_6 = arith.constant 0 : index
    %11 = vector.load %arg5[%c0_5, %c0_6] : memref<16x128xf32, #tpu.memory_space<vmem>>, vector<16x128xf32>
    tpu.vector_store %arg5[%c0_5, %c0_6], %10 {strides = array<i32>} : memref<16x128xf32, #tpu.memory_space<vmem>>, vector<16x128xf32>,
    %c0_7 = arith.constant 0 : index
    %c0_8 = arith.constant 0 : index
    %12 = vector.load %arg4[%c0_7, %c0_8] : memref<96x128xf32, #tpu.memory_space<vmem>>, vector<96x128xf32>
    %13 = tpu.iota {dimensions = array<i32: 1>} : vector<16x96xi32>
    %c0_i32_9 = arith.constant 0 : i32
    %14 = vector.broadcast %c0_i32_9 : i32 to vector<16x96xi32>
    %15 = arith.addi %14, %13 : vector<16x96xi32>
    %16 = vector.broadcast %1 : vector<16x1xi32> to vector<16x96xi32>
    %17 = arith.cmpi eq, %15, %16 : vector<16x96xi32>
    %18 = arith.extui %17 : vector<16x96xi1> to vector<16x96xi32>
    %19 = arith.sitofp %18 : vector<16x96xi32> to vector<16x96xf32>
    %cst_10 = arith.constant dense<0.000000e+00> : vector<16x128xf32>
    %20 = tpu.matmul %19, %12, %cst_10 {dimension_numbers = #tpu.dot_dimension_numbers<[1], [0], [0], [1], [0, 0, 1, 1], [], []>, precision = #tpu.contract_precision<fp32>} : vector<16x96xf32>, vector<96x128xf32>, vector<16x128xf32> -> vector<16x128xf32>
    %c0_11 = arith.constant 0 : index
    %c0_12 = arith.constant 0 : index
    %21 = vector.load %arg6[%c0_11, %c0_12] : memref<16x128xf32, #tpu.memory_space<vmem>>, vector<16x128xf32>
    tpu.vector_store %arg6[%c0_11, %c0_12], %20 {strides = array<i32>} : memref<16x128xf32, #tpu.memory_space<vmem>>, vector<16x128xf32>,
    return
  }
  func.func @transform_0(%arg0: i32) -> (i32, i32) {
    %c0_i32 = arith.constant 0 : i32
    %c0_i32_0 = arith.constant 0 : i32
    return %arg0, %c0_i32 : i32, i32
  }
  func.func @transform_1(%arg0: i32) -> (i32, i32) {
    %c0_i32 = arith.constant 0 : i32
    %c0_i32_0 = arith.constant 0 : i32
    return %arg0, %c0_i32 : i32, i32
  }
  func.func @transform_2(%arg0: i32) -> (i32, i32) {
    %c0_i32 = arith.constant 0 : i32
    %c0_i32_0 = arith.constant 0 : i32
    %c0_i32_1 = arith.constant 0 : i32
    return %c0_i32, %c0_i32_0 : i32, i32
  }
  func.func @transform_3(%arg0: i32) -> (i32, i32) {
    %c0_i32 = arith.constant 0 : i32
    %c0_i32_0 = arith.constant 0 : i32
    %c0_i32_1 = arith.constant 0 : i32
    return %c0_i32, %c0_i32_0 : i32, i32
  }
  func.func @transform_4(%arg0: i32) -> (i32, i32) {
    %c0_i32 = arith.constant 0 : i32
    %c0_i32_0 = arith.constant 0 : i32
    return %arg0, %c0_i32 : i32, i32
  }
  func.func @transform_5(%arg0: i32) -> (i32, i32) {
    %c0_i32 = arith.constant 0 : i32
    %c0_i32_0 = arith.constant 0 : i32
    return %arg0, %c0_i32 : i32, i32
  }
}

module attributes {stable_mosaic.version = 11 : i64} {
  func.func @kernel(%arg0: i32, %arg1: memref<16x1xi32, #tpu.memory_space<vmem>>, %arg2: memref<16x1xi32, #tpu.memory_space<vmem>>, %arg3: memref<64x128xf32, #tpu.memory_space<vmem>>, %arg4: memref<96x128xf32, #tpu.memory_space<vmem>>, %arg5: memref<16x128xf32, #tpu.memory_space<vmem>>, %arg6: memref<16x128xf32, #tpu.memory_space<vmem>>) attributes {dimension_semantics = [#tpu.dimension_semantics<parallel>], iteration_bounds = array<i64: 1>, scalar_prefetch = 0 : i64, scratch_operands = 0 : i64, tpu.core_type = #tpu.core_type<tc>, window_params = [{transform_indices = @transform_0, window_bounds = array<i64: 16, 1>}, {transform_indices = @transform_1, window_bounds = array<i64: 16, 1>}, {pipeline_mode = #tpu.pipeline_mode<synchronous>, transform_indices = @transform_2, window_bounds = array<i64: 64, 128>}, {pipeline_mode = #tpu.pipeline_mode<synchronous>, transform_indices = @transform_3, window_bounds = array<i64: 96, 128>}, {transform_indices = @transform_4, window_bounds = array<i64: 16, 128>}, {transform_indices = @transform_5, window_bounds = array<i64: 16, 128>}]} {
    %c0 = arith.constant 0 : index
    %c0_0 = arith.constant 0 : index
    %0 = vector.load %arg1[%c0, %c0_0] : memref<16x1xi32, #tpu.memory_space<vmem>>, vector<16x1xi32>
    %c0_1 = arith.constant 0 : index
    %c0_2 = arith.constant 0 : index
    %1 = vector.load %arg2[%c0_1, %c0_2] : memref<16x1xi32, #tpu.memory_space<vmem>>, vector<16x1xi32>
    %c0_3 = arith.constant 0 : index
    %c0_4 = arith.constant 0 : index
    %2 = vector.load %arg3[%c0_3, %c0_4] : memref<64x128xf32, #tpu.memory_space<vmem>>, vector<64x128xf32>
    %3 = tpu.iota {dimensions = array<i32: 1>} : vector<16x64xi32>
    %c0_i32 = arith.constant 0 : i32
    %4 = vector.broadcast %c0_i32 : i32 to vector<16x64xi32>
    %5 = arith.addi %4, %3 : vector<16x64xi32>
    %6 = vector.broadcast %0 : vector<16x1xi32> to vector<16x64xi32>
    %7 = arith.cmpi eq, %5, %6 : vector<16x64xi32>
    %8 = arith.extui %7 : vector<16x64xi1> to vector<16x64xi32>
    %9 = arith.sitofp %8 : vector<16x64xi32> to vector<16x64xf32>
    %cst = arith.constant dense<0.000000e+00> : vector<16x128xf32>
    %10 = tpu.matmul %9, %2, %cst {dimension_numbers = #tpu.dot_dimension_numbers<[1], [0], [0], [1], [0, 0, 1, 1], [], []>, precision = #tpu.contract_precision<fp32>} : vector<16x64xf32>, vector<64x128xf32>, vector<16x128xf32> -> vector<16x128xf32>
    %c0_5 = arith.constant 0 : index
    %c0_6 = arith.constant 0 : index
    %11 = vector.load %arg5[%c0_5, %c0_6] : memref<16x128xf32, #tpu.memory_space<vmem>>, vector<16x128xf32>
    tpu.vector_store %arg5[%c0_5, %c0_6], %10 {strides = array<i32>} : memref<16x128xf32, #tpu.memory_space<vmem>>, vector<16x128xf32>,
    %c0_7 = arith.constant 0 : index
    %c0_8 = arith.constant 0 : index
    %12 = vector.load %arg4[%c0_7, %c0_8] : memref<96x128xf32, #tpu.memory_space<vmem>>, vector<96x128xf32>
    %13 = tpu.iota {dimensions = array<i32: 1>} : vector<16x96xi32>
    %c0_i32_9 = arith.constant 0 : i32
    %14 = vector.broadcast %c0_i32_9 : i32 to vector<16x96xi32>
    %15 = arith.addi %14, %13 : vector<16x96xi32>
    %16 = vector.broadcast %1 : vector<16x1xi32> to vector<16x96xi32>
    %17 = arith.cmpi eq, %15, %16 : vector<16x96xi32>
    %18 = arith.extui %17 : vector<16x96xi1> to vector<16x96xi32>
    %19 = arith.sitofp %18 : vector<16x96xi32> to vector<16x96xf32>
    %cst_10 = arith.constant dense<0.000000e+00> : vector<16x128xf32>
    %20 = tpu.matmul %19, %12, %cst_10 {dimension_numbers = #tpu.dot_dimension_numbers<[1], [0], [0], [1], [0, 0, 1, 1], [], []>, precision = #tpu.contract_precision<fp32>} : vector<16x96xf32>, vector<96x128xf32>, vector<16x128xf32> -> vector<16x128xf32>
    %c0_11 = arith.constant 0 : index
    %c0_12 = arith.constant 0 : index
    %21 = vector.load %arg6[%c0_11, %c0_12] : memref<16x128xf32, #tpu.memory_space<vmem>>, vector<16x128xf32>
    tpu.vector_store %arg6[%c0_11, %c0_12], %20 {strides = array<i32>} : memref<16x128xf32, #tpu.memory_space<vmem>>, vector<16x128xf32>,
    return
  }
  func.func @transform_0(%arg0: i32) -> (i32, i32) {
    %c0_i32 = arith.constant 0 : i32
    %c0_i32_0 = arith.constant 0 : i32
    return %arg0, %c0_i32 : i32, i32
  }
  func.func @transform_1(%arg0: i32) -> (i32, i32) {
    %c0_i32 = arith.constant 0 : i32
    %c0_i32_0 = arith.constant 0 : i32
    return %arg0, %c0_i32 : i32, i32
  }
  func.func @transform_2(%arg0: i32) -> (i32, i32) {
    %c0_i32 = arith.constant 0 : i32
    %c0_i32_0 = arith.constant 0 : i32
    %c0_i32_1 = arith.constant 0 : i32
    return %c0_i32, %c0_i32_0 : i32, i32
  }
  func.func @transform_3(%arg0: i32) -> (i32, i32) {
    %c0_i32 = arith.constant 0 : i32
    %c0_i32_0 = arith.constant 0 : i32
    %c0_i32_1 = arith.constant 0 : i32
    return %c0_i32, %c0_i32_0 : i32, i32
  }
  func.func @transform_4(%arg0: i32) -> (i32, i32) {
    %c0_i32 = arith.constant 0 : i32
    %c0_i32_0 = arith.constant 0 : i32
    return %arg0, %c0_i32 : i32, i32
  }
  func.func @transform_5(%arg0: i32) -> (i32, i32) {
    %c0_i32 = arith.constant 0 : i32
    %c0_i32_0 = arith.constant 0 : i32
    return %arg0, %c0_i32 : i32, i32
  }
}

</mosaic_0001>

<llo_original>
// kernel: tpu_custom_call.1
$region0: #{tpu_custom_call.1}
  #allocation0 [shape = 'u32[]', space=smem, size = 0x4, offset = 0x4, fixed_abs, tag = 'smem constant byte address 0x4 - core index']
  #allocation1 [shape = 'u32[72,128]{1,0:T(1,128)}', space=vmem, size = 0x9000, scoped, tag = 'internal scratch']
  %s0 = inlined_call_operand.vmem [shape: s32[16,1], index: 0, kind: input, shape index: {}]
  %s1 = inlined_call_operand.vmem [shape: s32[16,1], index: 1, kind: input, shape index: {}]
  %s2 = inlined_call_operand.hbm [shape: f32[64,128], index: 2, kind: input, shape index: {}]
  %s3 = inlined_call_operand.hbm [shape: f32[96,128], index: 3, kind: input, shape index: {}]
  %s4 = inlined_call_operand.hbm [shape: f32[16,128], index: 4, kind: output, shape index: {0}]
  %s5 = inlined_call_operand.hbm [shape: f32[16,128], index: 5, kind: output, shape index: {1}]
  %6 = xla_tuple %s4, %s5
  %s7 = sld [smem:[#allocation0]]
  $region42: #{tpu_custom_call.1} parent=0
    _
  %s9 = ssub.s32 1, %s7
  %s10 = scalar_select 0, %s9, %s7
  $region1: #{tpu_custom_call.1} parent=0
    #allocation2 [shape = 'u8[32768]{0}', space=vmem, size = 0x8000, scoped, tag = 'input window, operand 2, single buffered']
    #allocation3 [shape = 's32[1]{0}', space=sflag, size = 0x4, scoped, tag = 'scoped memory for tpu_custom_call.1']
    #allocation4 [shape = 's32[1]{0}', space=sflag, size = 0x4, scoped, tag = 'scoped memory for tpu_custom_call.1']
    #allocation5 [shape = 'u8[49152]{0}', space=vmem, size = 0xc000, scoped, tag = 'input window, operand 3, single buffered']
    #allocation6 [shape = 's32[1]{0}', space=sflag, size = 0x4, scoped, tag = 'scoped memory for tpu_custom_call.1']
    #allocation7 [shape = 'u8[8192]{0}', space=vmem, size = 0x2000, scoped, tag = 'output window, operand 0, single buffered']
    #allocation8 [shape = 'u8[8192]{0}', space=vmem, size = 0x2000, scoped, tag = 'output window, operand 1, single buffered']
    #allocation9 [shape = 's32[1]{0}', space=sflag, size = 0x4, scoped, tag = 'scoped memory for tpu_custom_call.1']
    %11 = vsyncpa [#allocation3], 0
    %12 = vsyncpa [#allocation6], 0
    %13 = vsyncpa [#allocation4], 0
    %14 = vsyncpa [#allocation9], 0
    // Predicated region
    $region2: #{tpu_custom_call.1} parent=1 // pred_check
      _
    $region3: #{tpu_custom_call.1} parent=1 // pred_check_branch
      %16 = sbr.rel (0) target = $region5
    $region4: #{tpu_custom_call.1} parent=1 // pred_region
      _
    $region5: #{tpu_custom_call.1} parent=1 // pred_fallthru
      _
    // Predicated region
    $region6: #{tpu_custom_call.1} parent=1 // pred_check
      _
    $region7: #{tpu_custom_call.1} parent=1 // pred_check_branch
      %18 = sbr.rel (0) target = $region9
    $region8: #{tpu_custom_call.1} parent=1 // pred_region
      _
    $region9: #{tpu_custom_call.1} parent=1 // pred_fallthru
      _
    // Predicated region
    $region10: #{tpu_custom_call.1} parent=1 // pred_check
      _
    $region11: #{tpu_custom_call.1} parent=1 // pred_check_branch
      %20 = sbr.rel (0) target = $region13
    $region12: #{tpu_custom_call.1} parent=1 // pred_region
      %22 = vsyncadd [#allocation3], 0
      %s23 = sshll.u32 %s2, 4
      %s24 = int_to_ptr.hbm [resolvable:$true] %s23
      %s25 = sshll.u32 [#allocation2], 4
      %s26 = int_to_ptr.vmem [resolvable:$true] %s25
      %31 = dma.hbm_to_vmem [thread:$0]  %s24, 1024, %s26, [#allocation3], 128, 128, 8
    $region13: #{tpu_custom_call.1} parent=1 // pred_fallthru
      _
    // Predicated region
    $region14: #{tpu_custom_call.1} parent=1 // pred_check
      _
    $region15: #{tpu_custom_call.1} parent=1 // pred_check_branch
      %33 = sbr.rel (0) target = $region17
    $region16: #{tpu_custom_call.1} parent=1 // pred_region
      %35 = vsyncadd [#allocation6], 0
      %s36 = sshll.u32 %s3, 4
      %s37 = int_to_ptr.hbm [resolvable:$true] %s36
      %s38 = sshll.u32 [#allocation5], 4
      %s39 = int_to_ptr.vmem [resolvable:$true] %s38
      %44 = dma.hbm_to_vmem [thread:$0]  %s37, 1536, %s39, [#allocation6], 128, 128, 8
    $region17: #{tpu_custom_call.1} parent=1 // pred_fallthru
      _
    // Predicated region
    $region18: #{tpu_custom_call.1} parent=1 // pred_check
      _
    $region19: #{tpu_custom_call.1} parent=1 // pred_check_branch
      %46 = sbr.rel (0) target = $region21
    $region20: #{tpu_custom_call.1} parent=1 // pred_region
      %48 = dma.done [#allocation3], 1024
    $region21: #{tpu_custom_call.1} parent=1 // pred_fallthru
      _
    // Predicated region
    $region22: #{tpu_custom_call.1} parent=1 // pred_check
      _
    $region23: #{tpu_custom_call.1} parent=1 // pred_check_branch
      %50 = sbr.rel (0) target = $region25
    $region24: #{tpu_custom_call.1} parent=1 // pred_region
      %52 = dma.done [#allocation6], 1536
    $region25: #{tpu_custom_call.1} parent=1 // pred_fallthru
      _
    %v53 = vld [vmem:[%s0] sm:$0xff]
    %v54 = vld [vmem:[%s0 + $0x8] sm:$0xff]
    %v55 = vld [vmem:[%s1] sm:$0xff]
    %v56 = vld [vmem:[%s1 + $0x8] sm:$0xff]
    %v57 = vld [vmem:[#allocation2] sm:$0xff]
    %v58 = vld [vmem:[#allocation2 + $0x8] sm:$0xff]
    %v59 = vld [vmem:[#allocation2 + $0x10] sm:$0xff]
    %v60 = vld [vmem:[#allocation2 + $0x18] sm:$0xff]
    %v61 = vld [vmem:[#allocation2 + $0x20] sm:$0xff]
    %v62 = vld [vmem:[#allocation2 + $0x28] sm:$0xff]
    %v63 = vld [vmem:[#allocation2 + $0x30] sm:$0xff]
    %v64 = vld [vmem:[#allocation2 + $0x38] sm:$0xff]
    %v65 = vlaneseq
    %v66 = vand.u32 %v65, 127
    %67 = vset.pattern.permute.xlu0 0
    %68 = vperm.xlu0 %67, %v53
    %v69 = vpop.permute.xlu0 %68
    %70 = vset.pattern.permute.xlu0 0
    %71 = vperm.xlu0 %70, %v54
    %v72 = vpop.permute.xlu0 %71
    %vm73 = vcmp.eq.s32.totalorder %v66, %v69
    %vm74 = vcmp.eq.s32.totalorder %v66, %v72
    %v75 = vsel %vm73, 1, 0
    %v76 = vsel %vm74, 1, 0
    %v77 = vcvt.s32.f32 %v75
    %v78 = vcvt.s32.f32 %v76
    %vm79 = vcmask 523264
    %v81 = vsel %vm79, %v77, 0
    %v84 = vsel %vm79, %v78, 0
    %86 = vmatpush.msra.mxu0 0.0
    %87 = vmatpush.msra.mxu0 0.0
    %88 = vmatpush.msra.mxu0 0.0
    %89 = vmatpush.msra.mxu0 0.0
    %90 = vmatpush.msra.mxu0 0.0
    %91 = vmatpush.msra.mxu0 0.0
    %92 = vmatpush.msra.mxu0 0.0
    %93 = vmatpush.msra.mxu0 0.0
    %v94 = vand.u32 %v64, 4294901760
    %95 = vmatpush.msra.mxu0 %v94
    %v96 = vand.u32 %v63, 4294901760
    %97 = vmatpush.msra.mxu0 %v96
    %v98 = vand.u32 %v62, 4294901760
    %99 = vmatpush.msra.mxu0 %v98
    %v100 = vand.u32 %v61, 4294901760
    %101 = vmatpush.msra.mxu0 %v100
    %v102 = vand.u32 %v60, 4294901760
    %103 = vmatpush.msra.mxu0 %v102
    %v104 = vand.u32 %v59, 4294901760
    %105 = vmatpush.msra.mxu0 %v104
    %v106 = vand.u32 %v58, 4294901760
    %107 = vmatpush.msra.mxu0 %v106
    %v108 = vand.u32 %v57, 4294901760
    %109 = vmatpush.msra.mxu0 %v108
    %v110 = vand.u32 %v81, 4294901760
    %v111 = vsub.f32 %v81, %v110
    %v112 = vand.u32 %v111, 4294901760
    %v113 = vsub.f32 %v111, %v112
    %v114 = vand.u32 %v113, 4294901760
    %115 = vmatmul.f32.gmra.mxu0 %v114
    %v116 = vpop.f32.mrf.mxu0
    %v117 = vadd.f32 0.0, %v116
    %v118 = vand.u32 %v84, 4294901760
    %v119 = vsub.f32 %v84, %v118
    %v120 = vand.u32 %v119, 4294901760
    %v121 = vsub.f32 %v119, %v120
    %v122 = vand.u32 %v121, 4294901760
    %123 = vmatmul.f32.gmra.mxu0 %v122
    %v124 = vpop.f32.mrf.mxu0
    %v125 = vadd.f32 0.0, %v124
    %126 = vdwg.mxu0
    %127 = vmatpush.msra.mxu0 0.0
    %128 = vmatpush.msra.mxu0 0.0
    %129 = vmatpush.msra.mxu0 0.0
    %130 = vmatpush.msra.mxu0 0.0
    %131 = vmatpush.msra.mxu0 0.0
    %132 = vmatpush.msra.mxu0 0.0
    %133 = vmatpush.msra.mxu0 0.0
    %134 = vmatpush.msra.mxu0 0.0
    %v135 = vand.u32 %v64, 4294901760
    %v136 = vsub.f32 %v64, %v135
    %v137 = vand.u32 %v136, 4294901760
    %v138 = vsub.f32 %v136, %v137
    %v139 = vand.u32 %v138, 4294901760
    %140 = vmatpush.msra.mxu0 %v139
    %v141 = vand.u32 %v63, 4294901760
    %v142 = vsub.f32 %v63, %v141
    %v143 = vand.u32 %v142, 4294901760
    %v144 = vsub.f32 %v142, %v143
    %v145 = vand.u32 %v144, 4294901760
    %146 = vmatpush.msra.mxu0 %v145
    %v147 = vand.u32 %v62, 4294901760
    %v148 = vsub.f32 %v62, %v147
    %v149 = vand.u32 %v148, 4294901760
    %v150 = vsub.f32 %v148, %v149
    %v151 = vand.u32 %v150, 4294901760
    %152 = vmatpush.msra.mxu0 %v151
    %v153 = vand.u32 %v61, 4294901760
    %v154 = vsub.f32 %v61, %v153
    %v155 = vand.u32 %v154, 4294901760
    %v156 = vsub.f32 %v154, %v155
    %v157 = vand.u32 %v156, 4294901760
    %158 = vmatpush.msra.mxu0 %v157
    %v159 = vand.u32 %v60, 4294901760
    %v160 = vsub.f32 %v60, %v159
    %v161 = vand.u32 %v160, 4294901760
    %v162 = vsub.f32 %v160, %v161
    %v163 = vand.u32 %v162, 4294901760
    %164 = vmatpush.msra.mxu0 %v163
    %v165 = vand.u32 %v59, 4294901760
    %v166 = vsub.f32 %v59, %v165
    %v167 = vand.u32 %v166, 4294901760
    %v168 = vsub.f32 %v166, %v167
    %v169 = vand.u32 %v168, 4294901760
    %170 = vmatpush.msra.mxu0 %v169
    %v171 = vand.u32 %v58, 4294901760
    %v172 = vsub.f32 %v58, %v171
    %v173 = vand.u32 %v172, 4294901760
    %v174 = vsub.f32 %v172, %v173
    %v175 = vand.u32 %v174, 4294901760
    %176 = vmatpush.msra.mxu0 %v175
    %v177 = vand.u32 %v57, 4294901760
    %v178 = vsub.f32 %v57, %v177
    %v179 = vand.u32 %v178, 4294901760
    %v180 = vsub.f32 %v178, %v179
    %v181 = vand.u32 %v180, 4294901760
    %182 = vmatpush.msra.mxu0 %v181
    %v183 = vand.u32 %v81, 4294901760
    %184 = vmatmul.f32.gmra.mxu0 %v183
    %v185 = vpop.f32.mrf.mxu0
    %v186 = vadd.f32 %v117, %v185
    %v187 = vand.u32 %v84, 4294901760
    %188 = vmatmul.f32.gmra.mxu0 %v187
    %v189 = vpop.f32.mrf.mxu0
    %v190 = vadd.f32 %v125, %v189
    %191 = vdwg.mxu0
    %192 = vmatpush.msra.mxu0 0.0
    %193 = vmatpush.msra.mxu0 0.0
    %194 = vmatpush.msra.mxu0 0.0
    %195 = vmatpush.msra.mxu0 0.0
    %196 = vmatpush.msra.mxu0 0.0
    %197 = vmatpush.msra.mxu0 0.0
    %198 = vmatpush.msra.mxu0 0.0
    %199 = vmatpush.msra.mxu0 0.0
    %v200 = vand.u32 %v64, 4294901760
    %v201 = vsub.f32 %v64, %v200
    %202 = vmatpush.msra.mxu0 %v201
    %v203 = vand.u32 %v63, 4294901760
    %v204 = vsub.f32 %v63, %v203
    %205 = vmatpush.msra.mxu0 %v204
    %v206 = vand.u32 %v62, 4294901760
    %v207 = vsub.f32 %v62, %v206
    %208 = vmatpush.msra.mxu0 %v207
    %v209 = vand.u32 %v61, 4294901760
    %v210 = vsub.f32 %v61, %v209
    %211 = vmatpush.msra.mxu0 %v210
    %v212 = vand.u32 %v60, 4294901760
    %v213 = vsub.f32 %v60, %v212
    %214 = vmatpush.msra.mxu0 %v213
    %v215 = vand.u32 %v59, 4294901760
    %v216 = vsub.f32 %v59, %v215
    %217 = vmatpush.msra.mxu0 %v216
    %v218 = vand.u32 %v58, 4294901760
    %v219 = vsub.f32 %v58, %v218
    %220 = vmatpush.msra.mxu0 %v219
    %v221 = vand.u32 %v57, 4294901760
    %v222 = vsub.f32 %v57, %v221
    %223 = vmatpush.msra.mxu0 %v222
    %v224 = vand.u32 %v81, 4294901760
    %v225 = vsub.f32 %v81, %v224
    %226 = vmatmul.f32.gmra.mxu0 %v225
    %v227 = vpop.f32.mrf.mxu0
    %v228 = vadd.f32 %v186, %v227
    %v229 = vand.u32 %v84, 4294901760
    %v230 = vsub.f32 %v84, %v229
    %231 = vmatmul.f32.gmra.mxu0 %v230
    %v232 = vpop.f32.mrf.mxu0
    %v233 = vadd.f32 %v190, %v232
    %234 = vdwg.mxu0
    %235 = vmatpush.msra.mxu0 0.0
    %236 = vmatpush.msra.mxu0 0.0
    %237 = vmatpush.msra.mxu0 0.0
    %238 = vmatpush.msra.mxu0 0.0
    %239 = vmatpush.msra.mxu0 0.0
    %240 = vmatpush.msra.mxu0 0.0
    %241 = vmatpush.msra.mxu0 0.0
    %242 = vmatpush.msra.mxu0 0.0
    %v243 = vand.u32 %v64, 4294901760
    %244 = vmatpush.msra.mxu0 %v243
    %v245 = vand.u32 %v63, 4294901760
    %246 = vmatpush.msra.mxu0 %v245
    %v247 = vand.u32 %v62, 4294901760
    %248 = vmatpush.msra.mxu0 %v247
    %v249 = vand.u32 %v61, 4294901760
    %250 = vmatpush.msra.mxu0 %v249
    %v251 = vand.u32 %v60, 4294901760
    %252 = vmatpush.msra.mxu0 %v251
    %v253 = vand.u32 %v59, 4294901760
    %254 = vmatpush.msra.mxu0 %v253
    %v255 = vand.u32 %v58, 4294901760
    %256 = vmatpush.msra.mxu0 %v255
    %v257 = vand.u32 %v57, 4294901760
    %258 = vmatpush.msra.mxu0 %v257
    %v259 = vand.u32 %v81, 4294901760
    %v260 = vsub.f32 %v81, %v259
    %v261 = vand.u32 %v260, 4294901760
    %262 = vmatmul.f32.gmra.mxu0 %v261
    %v263 = vpop.f32.mrf.mxu0
    %v264 = vadd.f32 %v228, %v263
    %v265 = vand.u32 %v84, 4294901760
    %v266 = vsub.f32 %v84, %v265
    %v267 = vand.u32 %v266, 4294901760
    %268 = vmatmul.f32.gmra.mxu0 %v267
    %v269 = vpop.f32.mrf.mxu0
    %v270 = vadd.f32 %v233, %v269
    %271 = vdwg.mxu0
    %272 = vmatpush.msra.mxu0 0.0
    %273 = vmatpush.msra.mxu0 0.0
    %274 = vmatpush.msra.mxu0 0.0
    %275 = vmatpush.msra.mxu0 0.0
    %276 = vmatpush.msra.mxu0 0.0
    %277 = vmatpush.msra.mxu0 0.0
    %278 = vmatpush.msra.mxu0 0.0
    %279 = vmatpush.msra.mxu0 0.0
    %v280 = vand.u32 %v64, 4294901760
    %v281 = vsub.f32 %v64, %v280
    %v282 = vand.u32 %v281, 4294901760
    %283 = vmatpush.msra.mxu0 %v282
    %v284 = vand.u32 %v63, 4294901760
    %v285 = vsub.f32 %v63, %v284
    %v286 = vand.u32 %v285, 4294901760
    %287 = vmatpush.msra.mxu0 %v286
    %v288 = vand.u32 %v62, 4294901760
    %v289 = vsub.f32 %v62, %v288
    %v290 = vand.u32 %v289, 4294901760
    %291 = vmatpush.msra.mxu0 %v290
    %v292 = vand.u32 %v61, 4294901760
    %v293 = vsub.f32 %v61, %v292
    %v294 = vand.u32 %v293, 4294901760
    %295 = vmatpush.msra.mxu0 %v294
    %v296 = vand.u32 %v60, 4294901760
    %v297 = vsub.f32 %v60, %v296
    %v298 = vand.u32 %v297, 4294901760
    %299 = vmatpush.msra.mxu0 %v298
    %v300 = vand.u32 %v59, 4294901760
    %v301 = vsub.f32 %v59, %v300
    %v302 = vand.u32 %v301, 4294901760
    %303 = vmatpush.msra.mxu0 %v302
    %v304 = vand.u32 %v58, 4294901760
    %v305 = vsub.f32 %v58, %v304
    %v306 = vand.u32 %v305, 4294901760
    %307 = vmatpush.msra.mxu0 %v306
    %v308 = vand.u32 %v57, 4294901760
    %v309 = vsub.f32 %v57, %v308
    %v310 = vand.u32 %v309, 4294901760
    %311 = vmatpush.msra.mxu0 %v310
    %v312 = vand.u32 %v81, 4294901760
    %313 = vmatmul.f32.gmra.mxu0 %v312
    %v314 = vpop.f32.mrf.mxu0
    %v315 = vadd.f32 %v264, %v314
    %v316 = vand.u32 %v84, 4294901760
    %317 = vmatmul.f32.gmra.mxu0 %v316
    %v318 = vpop.f32.mrf.mxu0
    %v319 = vadd.f32 %v270, %v318
    %320 = vdwg.mxu0
    %321 = vmatpush.msra.mxu0 0.0
    %322 = vmatpush.msra.mxu0 0.0
    %323 = vmatpush.msra.mxu0 0.0
    %324 = vmatpush.msra.mxu0 0.0
    %325 = vmatpush.msra.mxu0 0.0
    %326 = vmatpush.msra.mxu0 0.0
    %327 = vmatpush.msra.mxu0 0.0
    %328 = vmatpush.msra.mxu0 0.0
    %v329 = vand.u32 %v64, 4294901760
    %330 = vmatpush.msra.mxu0 %v329
    %v331 = vand.u32 %v63, 4294901760
    %332 = vmatpush.msra.mxu0 %v331
    %v333 = vand.u32 %v62, 4294901760
    %334 = vmatpush.msra.mxu0 %v333
    %v335 = vand.u32 %v61, 4294901760
    %336 = vmatpush.msra.mxu0 %v335
    %v337 = vand.u32 %v60, 4294901760
    %338 = vmatpush.msra.mxu0 %v337
    %v339 = vand.u32 %v59, 4294901760
    %340 = vmatpush.msra.mxu0 %v339
    %v341 = vand.u32 %v58, 4294901760
    %342 = vmatpush.msra.mxu0 %v341
    %v343 = vand.u32 %v57, 4294901760
    %344 = vmatpush.msra.mxu0 %v343
    %v345 = vand.u32 %v81, 4294901760
    %346 = vmatmul.f32.gmra.mxu0 %v345
    %v347 = vpop.f32.mrf.mxu0
    %v348 = vadd.f32 %v315, %v347
    %v349 = vand.u32 %v84, 4294901760
    %350 = vmatmul.f32.gmra.mxu0 %v349
    %v351 = vpop.f32.mrf.mxu0
    %v352 = vadd.f32 %v319, %v351
    %353 = vdwg.mxu0
    %354 = vst [vmem:[#allocation7] sm:$0xff] %v348
    %355 = vst [vmem:[#allocation7 + $0x8] sm:$0xff] %v352
    %v356 = vld [vmem:[#allocation5] sm:$0xff]
    %v357 = vld [vmem:[#allocation5 + $0x8] sm:$0xff]
    %v358 = vld [vmem:[#allocation5 + $0x10] sm:$0xff]
    %v359 = vld [vmem:[#allocation5 + $0x18] sm:$0xff]
    %v360 = vld [vmem:[#allocation5 + $0x20] sm:$0xff]
    %v361 = vld [vmem:[#allocation5 + $0x28] sm:$0xff]
    %v362 = vld [vmem:[#allocation5 + $0x30] sm:$0xff]
    %v363 = vld [vmem:[#allocation5 + $0x38] sm:$0xff]
    %v364 = vld [vmem:[#allocation5 + $0x40] sm:$0xff]
    %v365 = vld [vmem:[#allocation5 + $0x48] sm:$0xff]
    %v366 = vld [vmem:[#allocation5 + $0x50] sm:$0xff]
    %v367 = vld [vmem:[#allocation5 + $0x58] sm:$0xff]
    %368 = vset.pattern.permute.xlu0 0
    %369 = vperm.xlu0 %368, %v55
    %v370 = vpop.permute.xlu0 %369
    %371 = vset.pattern.permute.xlu0 0
    %372 = vperm.xlu0 %371, %v56
    %v373 = vpop.permute.xlu0 %372
    %vm374 = vcmp.eq.s32.totalorder %v66, %v370
    %vm375 = vcmp.eq.s32.totalorder %v66, %v373
    %v376 = vsel %vm374, 1, 0
    %v377 = vsel %vm375, 1, 0
    %v378 = vcvt.s32.f32 %v376
    %v379 = vcvt.s32.f32 %v377
    %vm380 = vcmask 785408
    %v382 = vsel %vm380, %v378, 0
    %v385 = vsel %vm380, %v379, 0
    %387 = vmatpush.msra.mxu0 0.0
    %388 = vmatpush.msra.mxu0 0.0
    %389 = vmatpush.msra.mxu0 0.0
    %390 = vmatpush.msra.mxu0 0.0
    %v391 = vand.u32 %v367, 4294901760
    %392 = vmatpush.msra.mxu0 %v391
    %v393 = vand.u32 %v366, 4294901760
    %394 = vmatpush.msra.mxu0 %v393
    %v395 = vand.u32 %v365, 4294901760
    %396 = vmatpush.msra.mxu0 %v395
    %v397 = vand.u32 %v364, 4294901760
    %398 = vmatpush.msra.mxu0 %v397
    %v399 = vand.u32 %v363, 4294901760
    %400 = vmatpush.msra.mxu0 %v399
    %v401 = vand.u32 %v362, 4294901760
    %402 = vmatpush.msra.mxu0 %v401
    %v403 = vand.u32 %v361, 4294901760
    %404 = vmatpush.msra.mxu0 %v403
    %v405 = vand.u32 %v360, 4294901760
    %406 = vmatpush.msra.mxu0 %v405
    %v407 = vand.u32 %v359, 4294901760
    %408 = vmatpush.msra.mxu0 %v407
    %v409 = vand.u32 %v358, 4294901760
    %410 = vmatpush.msra.mxu0 %v409
    %v411 = vand.u32 %v357, 4294901760
    %412 = vmatpush.msra.mxu0 %v411
    %v413 = vand.u32 %v356, 4294901760
    %414 = vmatpush.msra.mxu0 %v413
    %v415 = vand.u32 %v382, 4294901760
    %v416 = vsub.f32 %v382, %v415
    %v417 = vand.u32 %v416, 4294901760
    %v418 = vsub.f32 %v416, %v417
    %v419 = vand.u32 %v418, 4294901760
    %420 = vmatmul.f32.gmra.mxu0 %v419
    %v421 = vpop.f32.mrf.mxu0
    %v422 = vadd.f32 0.0, %v421
    %v423 = vand.u32 %v385, 4294901760
    %v424 = vsub.f32 %v385, %v423
    %v425 = vand.u32 %v424, 4294901760
    %v426 = vsub.f32 %v424, %v425
    %v427 = vand.u32 %v426, 4294901760
    %428 = vmatmul.f32.gmra.mxu0 %v427
    %v429 = vpop.f32.mrf.mxu0
    %v430 = vadd.f32 0.0, %v429
    %431 = vdwg.mxu0
    %432 = vmatpush.msra.mxu0 0.0
    %433 = vmatpush.msra.mxu0 0.0
    %434 = vmatpush.msra.mxu0 0.0
    %435 = vmatpush.msra.mxu0 0.0
    %v436 = vand.u32 %v367, 4294901760
    %v437 = vsub.f32 %v367, %v436
    %v438 = vand.u32 %v437, 4294901760
    %v439 = vsub.f32 %v437, %v438
    %v440 = vand.u32 %v439, 4294901760
    %441 = vmatpush.msra.mxu0 %v440
    %v442 = vand.u32 %v366, 4294901760
    %v443 = vsub.f32 %v366, %v442
    %v444 = vand.u32 %v443, 4294901760
    %v445 = vsub.f32 %v443, %v444
    %v446 = vand.u32 %v445, 4294901760
    %447 = vmatpush.msra.mxu0 %v446
    %v448 = vand.u32 %v365, 4294901760
    %v449 = vsub.f32 %v365, %v448
    %v450 = vand.u32 %v449, 4294901760
    %v451 = vsub.f32 %v449, %v450
    %v452 = vand.u32 %v451, 4294901760
    %453 = vmatpush.msra.mxu0 %v452
    %v454 = vand.u32 %v364, 4294901760
    %v455 = vsub.f32 %v364, %v454
    %v456 = vand.u32 %v455, 4294901760
    %v457 = vsub.f32 %v455, %v456
    %v458 = vand.u32 %v457, 4294901760
    %459 = vmatpush.msra.mxu0 %v458
    %v460 = vand.u32 %v363, 4294901760
    %v461 = vsub.f32 %v363, %v460
    %v462 = vand.u32 %v461, 4294901760
    %v463 = vsub.f32 %v461, %v462
    %v464 = vand.u32 %v463, 4294901760
    %465 = vmatpush.msra.mxu0 %v464
    %v466 = vand.u32 %v362, 4294901760
    %v467 = vsub.f32 %v362, %v466
    %v468 = vand.u32 %v467, 4294901760
    %v469 = vsub.f32 %v467, %v468
    %v470 = vand.u32 %v469, 4294901760
    %471 = vmatpush.msra.mxu0 %v470
    %v472 = vand.u32 %v361, 4294901760
    %v473 = vsub.f32 %v361, %v472
    %v474 = vand.u32 %v473, 4294901760
    %v475 = vsub.f32 %v473, %v474
    %v476 = vand.u32 %v475, 4294901760
    %477 = vmatpush.msra.mxu0 %v476
    %v478 = vand.u32 %v360, 4294901760
    %v479 = vsub.f32 %v360, %v478
    %v480 = vand.u32 %v479, 4294901760
    %v481 = vsub.f32 %v479, %v480
    %v482 = vand.u32 %v481, 4294901760
    %483 = vmatpush.msra.mxu0 %v482
    %v484 = vand.u32 %v359, 4294901760
    %v485 = vsub.f32 %v359, %v484
    %v486 = vand.u32 %v485, 4294901760
    %v487 = vsub.f32 %v485, %v486
    %v488 = vand.u32 %v487, 4294901760
    %489 = vmatpush.msra.mxu0 %v488
    %v490 = vand.u32 %v358, 4294901760
    %v491 = vsub.f32 %v358, %v490
    %v492 = vand.u32 %v491, 4294901760
    %v493 = vsub.f32 %v491, %v492
    %v494 = vand.u32 %v493, 4294901760
    %495 = vmatpush.msra.mxu0 %v494
    %v496 = vand.u32 %v357, 4294901760
    %v497 = vsub.f32 %v357, %v496
    %v498 = vand.u32 %v497, 4294901760
    %v499 = vsub.f32 %v497, %v498
    %v500 = vand.u32 %v499, 4294901760
    %501 = vmatpush.msra.mxu0 %v500
    %v502 = vand.u32 %v356, 4294901760
    %v503 = vsub.f32 %v356, %v502
    %v504 = vand.u32 %v503, 4294901760
    %v505 = vsub.f32 %v503, %v504
    %v506 = vand.u32 %v505, 4294901760
    %507 = vmatpush.msra.mxu0 %v506
    %v508 = vand.u32 %v382, 4294901760
    %509 = vmatmul.f32.gmra.mxu0 %v508
    %v510 = vpop.f32.mrf.mxu0
    %v511 = vadd.f32 %v422, %v510
    %v512 = vand.u32 %v385, 4294901760
    %513 = vmatmul.f32.gmra.mxu0 %v512
    %v514 = vpop.f32.mrf.mxu0
    %v515 = vadd.f32 %v430, %v514
    %516 = vdwg.mxu0
    %517 = vmatpush.msra.mxu0 0.0
    %518 = vmatpush.msra.mxu0 0.0
    %519 = vmatpush.msra.mxu0 0.0
    %520 = vmatpush.msra.mxu0 0.0
    %v521 = vand.u32 %v367, 4294901760
    %v522 = vsub.f32 %v367, %v521
    %523 = vmatpush.msra.mxu0 %v522
    %v524 = vand.u32 %v366, 4294901760
    %v525 = vsub.f32 %v366, %v524
    %526 = vmatpush.msra.mxu0 %v525
    %v527 = vand.u32 %v365, 4294901760
    %v528 = vsub.f32 %v365, %v527
    %529 = vmatpush.msra.mxu0 %v528
    %v530 = vand.u32 %v364, 4294901760
    %v531 = vsub.f32 %v364, %v530
    %532 = vmatpush.msra.mxu0 %v531
    %v533 = vand.u32 %v363, 4294901760
    %v534 = vsub.f32 %v363, %v533
    %535 = vmatpush.msra.mxu0 %v534
    %v536 = vand.u32 %v362, 4294901760
    %v537 = vsub.f32 %v362, %v536
    %538 = vmatpush.msra.mxu0 %v537
    %v539 = vand.u32 %v361, 4294901760
    %v540 = vsub.f32 %v361, %v539
    %541 = vmatpush.msra.mxu0 %v540
    %v542 = vand.u32 %v360, 4294901760
    %v543 = vsub.f32 %v360, %v542
    %544 = vmatpush.msra.mxu0 %v543
    %v545 = vand.u32 %v359, 4294901760
    %v546 = vsub.f32 %v359, %v545
    %547 = vmatpush.msra.mxu0 %v546
    %v548 = vand.u32 %v358, 4294901760
    %v549 = vsub.f32 %v358, %v548
    %550 = vmatpush.msra.mxu0 %v549
    %v551 = vand.u32 %v357, 4294901760
    %v552 = vsub.f32 %v357, %v551
    %553 = vmatpush.msra.mxu0 %v552
    %v554 = vand.u32 %v356, 4294901760
    %v555 = vsub.f32 %v356, %v554
    %556 = vmatpush.msra.mxu0 %v555
    %v557 = vand.u32 %v382, 4294901760
    %v558 = vsub.f32 %v382, %v557
    %559 = vmatmul.f32.gmra.mxu0 %v558
    %v560 = vpop.f32.mrf.mxu0
    %v561 = vadd.f32 %v511, %v560
    %v562 = vand.u32 %v385, 4294901760
    %v563 = vsub.f32 %v385, %v562
    %564 = vmatmul.f32.gmra.mxu0 %v563
    %v565 = vpop.f32.mrf.mxu0
    %v566 = vadd.f32 %v515, %v565
    %567 = vdwg.mxu0
    %568 = vmatpush.msra.mxu0 0.0
    %569 = vmatpush.msra.mxu0 0.0
    %570 = vmatpush.msra.mxu0 0.0
    %571 = vmatpush.msra.mxu0 0.0
    %v572 = vand.u32 %v367, 4294901760
    %573 = vmatpush.msra.mxu0 %v572
    %v574 = vand.u32 %v366, 4294901760
    %575 = vmatpush.msra.mxu0 %v574
    %v576 = vand.u32 %v365, 4294901760
    %577 = vmatpush.msra.mxu0 %v576
    %v578 = vand.u32 %v364, 4294901760
    %579 = vmatpush.msra.mxu0 %v578
    %v580 = vand.u32 %v363, 4294901760
    %581 = vmatpush.msra.mxu0 %v580
    %v582 = vand.u32 %v362, 4294901760
    %583 = vmatpush.msra.mxu0 %v582
    %v584 = vand.u32 %v361, 4294901760
    %585 = vmatpush.msra.mxu0 %v584
    %v586 = vand.u32 %v360, 4294901760
    %587 = vmatpush.msra.mxu0 %v586
    %v588 = vand.u32 %v359, 4294901760
    %589 = vmatpush.msra.mxu0 %v588
    %v590 = vand.u32 %v358, 4294901760
    %591 = vmatpush.msra.mxu0 %v590
    %v592 = vand.u32 %v357, 4294901760
    %593 = vmatpush.msra.mxu0 %v592
    %v594 = vand.u32 %v356, 4294901760
    %595 = vmatpush.msra.mxu0 %v594
    %v596 = vand.u32 %v382, 4294901760
    %v597 = vsub.f32 %v382, %v596
    %v598 = vand.u32 %v597, 4294901760
    %599 = vmatmul.f32.gmra.mxu0 %v598
    %v600 = vpop.f32.mrf.mxu0
    %v601 = vadd.f32 %v561, %v600
    %v602 = vand.u32 %v385, 4294901760
    %v603 = vsub.f32 %v385, %v602
    %v604 = vand.u32 %v603, 4294901760
    %605 = vmatmul.f32.gmra.mxu0 %v604
    %v606 = vpop.f32.mrf.mxu0
    %v607 = vadd.f32 %v566, %v606
    %608 = vdwg.mxu0
    %609 = vmatpush.msra.mxu0 0.0
    %610 = vmatpush.msra.mxu0 0.0
    %611 = vmatpush.msra.mxu0 0.0
    %612 = vmatpush.msra.mxu0 0.0
    %v613 = vand.u32 %v367, 4294901760
    %v614 = vsub.f32 %v367, %v613
    %v615 = vand.u32 %v614, 4294901760
    %616 = vmatpush.msra.mxu0 %v615
    %v617 = vand.u32 %v366, 4294901760
    %v618 = vsub.f32 %v366, %v617
    %v619 = vand.u32 %v618, 4294901760
    %620 = vmatpush.msra.mxu0 %v619
    %v621 = vand.u32 %v365, 4294901760
    %v622 = vsub.f32 %v365, %v621
    %v623 = vand.u32 %v622, 4294901760
    %624 = vmatpush.msra.mxu0 %v623
    %v625 = vand.u32 %v364, 4294901760
    %v626 = vsub.f32 %v364, %v625
    %v627 = vand.u32 %v626, 4294901760
    %628 = vmatpush.msra.mxu0 %v627
    %v629 = vand.u32 %v363, 4294901760
    %v630 = vsub.f32 %v363, %v629
    %v631 = vand.u32 %v630, 4294901760
    %632 = vmatpush.msra.mxu0 %v631
    %v633 = vand.u32 %v362, 4294901760
    %v634 = vsub.f32 %v362, %v633
    %v635 = vand.u32 %v634, 4294901760
    %636 = vmatpush.msra.mxu0 %v635
    %v637 = vand.u32 %v361, 4294901760
    %v638 = vsub.f32 %v361, %v637
    %v639 = vand.u32 %v638, 4294901760
    %640 = vmatpush.msra.mxu0 %v639
    %v641 = vand.u32 %v360, 4294901760
    %v642 = vsub.f32 %v360, %v641
    %v643 = vand.u32 %v642, 4294901760
    %644 = vmatpush.msra.mxu0 %v643
    %v645 = vand.u32 %v359, 4294901760
    %v646 = vsub.f32 %v359, %v645
    %v647 = vand.u32 %v646, 4294901760
    %648 = vmatpush.msra.mxu0 %v647
    %v649 = vand.u32 %v358, 4294901760
    %v650 = vsub.f32 %v358, %v649
    %v651 = vand.u32 %v650, 4294901760
    %652 = vmatpush.msra.mxu0 %v651
    %v653 = vand.u32 %v357, 4294901760
    %v654 = vsub.f32 %v357, %v653
    %v655 = vand.u32 %v654, 4294901760
    %656 = vmatpush.msra.mxu0 %v655
    %v657 = vand.u32 %v356, 4294901760
    %v658 = vsub.f32 %v356, %v657
    %v659 = vand.u32 %v658, 4294901760
    %660 = vmatpush.msra.mxu0 %v659
    %v661 = vand.u32 %v382, 4294901760
    %662 = vmatmul.f32.gmra.mxu0 %v661
    %v663 = vpop.f32.mrf.mxu0
    %v664 = vadd.f32 %v601, %v663
    %v665 = vand.u32 %v385, 4294901760
    %666 = vmatmul.f32.gmra.mxu0 %v665
    %v667 = vpop.f32.mrf.mxu0
    %v668 = vadd.f32 %v607, %v667
    %669 = vdwg.mxu0
    %670 = vmatpush.msra.mxu0 0.0
    %671 = vmatpush.msra.mxu0 0.0
    %672 = vmatpush.msra.mxu0 0.0
    %673 = vmatpush.msra.mxu0 0.0
    %v674 = vand.u32 %v367, 4294901760
    %675 = vmatpush.msra.mxu0 %v674
    %v676 = vand.u32 %v366, 4294901760
    %677 = vmatpush.msra.mxu0 %v676
    %v678 = vand.u32 %v365, 4294901760
    %679 = vmatpush.msra.mxu0 %v678
    %v680 = vand.u32 %v364, 4294901760
    %681 = vmatpush.msra.mxu0 %v680
    %v682 = vand.u32 %v363, 4294901760
    %683 = vmatpush.msra.mxu0 %v682
    %v684 = vand.u32 %v362, 4294901760
    %685 = vmatpush.msra.mxu0 %v684
    %v686 = vand.u32 %v361, 4294901760
    %687 = vmatpush.msra.mxu0 %v686
    %v688 = vand.u32 %v360, 4294901760
    %689 = vmatpush.msra.mxu0 %v688
    %v690 = vand.u32 %v359, 4294901760
    %691 = vmatpush.msra.mxu0 %v690
    %v692 = vand.u32 %v358, 4294901760
    %693 = vmatpush.msra.mxu0 %v692
    %v694 = vand.u32 %v357, 4294901760
    %695 = vmatpush.msra.mxu0 %v694
    %v696 = vand.u32 %v356, 4294901760
    %697 = vmatpush.msra.mxu0 %v696
    %v698 = vand.u32 %v382, 4294901760
    %699 = vmatmul.f32.gmra.mxu0 %v698
    %v700 = vpop.f32.mrf.mxu0
    %v701 = vadd.f32 %v664, %v700
    %v702 = vand.u32 %v385, 4294901760
    %703 = vmatmul.f32.gmra.mxu0 %v702
    %v704 = vpop.f32.mrf.mxu0
    %v705 = vadd.f32 %v668, %v704
    %706 = vdwg.mxu0
    %707 = vst [vmem:[#allocation8] sm:$0xff] %v701
    %708 = vst [vmem:[#allocation8 + $0x8] sm:$0xff] %v705
    // Predicated region
    $region26: #{tpu_custom_call.1} parent=1 // pred_check
      _
    $region27: #{tpu_custom_call.1} parent=1 // pred_check_branch
      %710 = sbr.rel (0) target = $region29
    $region28: #{tpu_custom_call.1} parent=1 // pred_region
      %712 = vsyncadd [#allocation4], 0
      %s713 = sshll.u32 [#allocation7], 4
      %s714 = int_to_ptr.vmem [resolvable:$true] %s713
      %s715 = sshll.u32 %s4, 4
      %s716 = int_to_ptr.hbm [resolvable:$true] %s715
      %721 = dma.vmem_to_hbm [thread:$0]  %s714, 256, %s716, [#allocation4], 128, 128, 8
    $region29: #{tpu_custom_call.1} parent=1 // pred_fallthru
      _
    // Predicated region
    $region30: #{tpu_custom_call.1} parent=1 // pred_check
      _
    $region31: #{tpu_custom_call.1} parent=1 // pred_check_branch
      %723 = sbr.rel (0) target = $region33
    $region32: #{tpu_custom_call.1} parent=1 // pred_region
      %725 = vsyncadd [#allocation9], 0
      %s726 = sshll.u32 [#allocation8], 4
      %s727 = int_to_ptr.vmem [resolvable:$true] %s726
      %s728 = sshll.u32 %s5, 4
      %s729 = int_to_ptr.hbm [resolvable:$true] %s728
      %734 = dma.vmem_to_hbm [thread:$0]  %s727, 256, %s729, [#allocation9], 128, 128, 8
    $region33: #{tpu_custom_call.1} parent=1 // pred_fallthru
      _
    // Predicated region
    $region34: #{tpu_custom_call.1} parent=1 // pred_check
      _
    $region35: #{tpu_custom_call.1} parent=1 // pred_check_branch
      %736 = sbr.rel (0) target = $region37
    $region36: #{tpu_custom_call.1} parent=1 // pred_region
      %738 = dma.done [#allocation4], 256
    $region37: #{tpu_custom_call.1} parent=1 // pred_fallthru
      _
    // Predicated region
    $region38: #{tpu_custom_call.1} parent=1 // pred_check
      _
    $region39: #{tpu_custom_call.1} parent=1 // pred_check_branch
      %740 = sbr.rel (0) target = $region41
    $region40: #{tpu_custom_call.1} parent=1 // pred_region
      %742 = dma.done [#allocation9], 256
    $region41: #{tpu_custom_call.1} parent=1 // pred_fallthru
      _
    %743 = vsyncpa [#allocation3], 1
    %744 = vsyncpa [#allocation6], 1
    %745 = vsyncpa [#allocation4], 1
    %746 = vsyncpa [#allocation9], 1

// kernel: tpu_custom_call.1
$region0: #{tpu_custom_call.1}
  #allocation0 [shape = 'u32[]', space=smem, size = 0x4, offset = 0x4, fixed_abs, tag = 'smem constant byte address 0x4 - core index']
  #allocation1 [shape = 'u32[72,128]{1,0:T(1,128)}', space=vmem, size = 0x9000, scoped, tag = 'internal scratch']
  %s0 = inlined_call_operand.vmem [shape: s32[16,1], index: 0, kind: input, shape index: {}]
  %s1 = inlined_call_operand.vmem [shape: s32[16,1], index: 1, kind: input, shape index: {}]
  %s2 = inlined_call_operand.hbm [shape: f32[64,128], index: 2, kind: input, shape index: {}]
  %s3 = inlined_call_operand.hbm [shape: f32[96,128], index: 3, kind: input, shape index: {}]
  %s4 = inlined_call_operand.hbm [shape: f32[16,128], index: 4, kind: output, shape index: {0}]
  %s5 = inlined_call_operand.hbm [shape: f32[16,128], index: 5, kind: output, shape index: {1}]
  %6 = xla_tuple %s4, %s5
  %s7 = sld [smem:[#allocation0]]
  $region42: #{tpu_custom_call.1} parent=0
    _
  %s9 = ssub.s32 1, %s7
  %s10 = scalar_select 0, %s9, %s7
  $region1: #{tpu_custom_call.1} parent=0
    #allocation2 [shape = 'u8[32768]{0}', space=vmem, size = 0x8000, scoped, tag = 'input window, operand 2, single buffered']
    #allocation3 [shape = 's32[1]{0}', space=sflag, size = 0x4, scoped, tag = 'scoped memory for tpu_custom_call.1']
    #allocation4 [shape = 's32[1]{0}', space=sflag, size = 0x4, scoped, tag = 'scoped memory for tpu_custom_call.1']
    #allocation5 [shape = 'u8[49152]{0}', space=vmem, size = 0xc000, scoped, tag = 'input window, operand 3, single buffered']
    #allocation6 [shape = 's32[1]{0}', space=sflag, size = 0x4, scoped, tag = 'scoped memory for tpu_custom_call.1']
    #allocation7 [shape = 'u8[8192]{0}', space=vmem, size = 0x2000, scoped, tag = 'output window, operand 0, single buffered']
    #allocation8 [shape = 'u8[8192]{0}', space=vmem, size = 0x2000, scoped, tag = 'output window, operand 1, single buffered']
    #allocation9 [shape = 's32[1]{0}', space=sflag, size = 0x4, scoped, tag = 'scoped memory for tpu_custom_call.1']
    %11 = vsyncpa [#allocation3], 0
    %12 = vsyncpa [#allocation6], 0
    %13 = vsyncpa [#allocation4], 0
    %14 = vsyncpa [#allocation9], 0
    // Predicated region
    $region2: #{tpu_custom_call.1} parent=1 // pred_check
      _
    $region3: #{tpu_custom_call.1} parent=1 // pred_check_branch
      %16 = sbr.rel (0) target = $region5
    $region4: #{tpu_custom_call.1} parent=1 // pred_region
      _
    $region5: #{tpu_custom_call.1} parent=1 // pred_fallthru
      _
    // Predicated region
    $region6: #{tpu_custom_call.1} parent=1 // pred_check
      _
    $region7: #{tpu_custom_call.1} parent=1 // pred_check_branch
      %18 = sbr.rel (0) target = $region9
    $region8: #{tpu_custom_call.1} parent=1 // pred_region
      _
    $region9: #{tpu_custom_call.1} parent=1 // pred_fallthru
      _
    // Predicated region
    $region10: #{tpu_custom_call.1} parent=1 // pred_check
      _
    $region11: #{tpu_custom_call.1} parent=1 // pred_check_branch
      %20 = sbr.rel (0) target = $region13
    $region12: #{tpu_custom_call.1} parent=1 // pred_region
      %22 = vsyncadd [#allocation3], 0
      %s23 = sshll.u32 %s2, 4
      %s24 = int_to_ptr.hbm [resolvable:$true] %s23
      %s25 = sshll.u32 [#allocation2], 4
      %s26 = int_to_ptr.vmem [resolvable:$true] %s25
      %31 = dma.hbm_to_vmem [thread:$0]  %s24, 1024, %s26, [#allocation3], 128, 128, 8
    $region13: #{tpu_custom_call.1} parent=1 // pred_fallthru
      _
    // Predicated region
    $region14: #{tpu_custom_call.1} parent=1 // pred_check
      _
    $region15: #{tpu_custom_call.1} parent=1 // pred_check_branch
      %33 = sbr.rel (0) target = $region17
    $region16: #{tpu_custom_call.1} parent=1 // pred_region
      %35 = vsyncadd [#allocation6], 0
      %s36 = sshll.u32 %s3, 4
      %s37 = int_to_ptr.hbm [resolvable:$true] %s36
      %s38 = sshll.u32 [#allocation5], 4
      %s39 = int_to_ptr.vmem [resolvable:$true] %s38
      %44 = dma.hbm_to_vmem [thread:$0]  %s37, 1536, %s39, [#allocation6], 128, 128, 8
    $region17: #{tpu_custom_call.1} parent=1 // pred_fallthru
      _
    // Predicated region
    $region18: #{tpu_custom_call.1} parent=1 // pred_check
      _
    $region19: #{tpu_custom_call.1} parent=1 // pred_check_branch
      %46 = sbr.rel (0) target = $region21
    $region20: #{tpu_custom_call.1} parent=1 // pred_region
      %48 = dma.done [#allocation3], 1024
    $region21: #{tpu_custom_call.1} parent=1 // pred_fallthru
      _
    // Predicated region
    $region22: #{tpu_custom_call.1} parent=1 // pred_check
      _
    $region23: #{tpu_custom_call.1} parent=1 // pred_check_branch
      %50 = sbr.rel (0) target = $region25
    $region24: #{tpu_custom_call.1} parent=1 // pred_region
      %52 = dma.done [#allocation6], 1536
    $region25: #{tpu_custom_call.1} parent=1 // pred_fallthru
      _
    %v53 = vld [vmem:[%s0] sm:$0xff]
    %v54 = vld [vmem:[%s0 + $0x8] sm:$0xff]
    %v55 = vld [vmem:[%s1] sm:$0xff]
    %v56 = vld [vmem:[%s1 + $0x8] sm:$0xff]
    %v57 = vld [vmem:[#allocation2] sm:$0xff]
    %v58 = vld [vmem:[#allocation2 + $0x8] sm:$0xff]
    %v59 = vld [vmem:[#allocation2 + $0x10] sm:$0xff]
    %v60 = vld [vmem:[#allocation2 + $0x18] sm:$0xff]
    %v61 = vld [vmem:[#allocation2 + $0x20] sm:$0xff]
    %v62 = vld [vmem:[#allocation2 + $0x28] sm:$0xff]
    %v63 = vld [vmem:[#allocation2 + $0x30] sm:$0xff]
    %v64 = vld [vmem:[#allocation2 + $0x38] sm:$0xff]
    %v65 = vlaneseq
    %v66 = vand.u32 %v65, 127
    %67 = vset.pattern.permute.xlu0 0
    %68 = vperm.xlu0 %67, %v53
    %v69 = vpop.permute.xlu0 %68
    %70 = vset.pattern.permute.xlu0 0
    %71 = vperm.xlu0 %70, %v54
    %v72 = vpop.permute.xlu0 %71
    %vm73 = vcmp.eq.s32.totalorder %v66, %v69
    %vm74 = vcmp.eq.s32.totalorder %v66, %v72
    %v75 = vsel %vm73, 1, 0
    %v76 = vsel %vm74, 1, 0
    %v77 = vcvt.s32.f32 %v75
    %v78 = vcvt.s32.f32 %v76
    %vm79 = vcmask 523264
    %v81 = vsel %vm79, %v77, 0
    %v84 = vsel %vm79, %v78, 0
    %86 = vmatpush.msra.mxu0 0.0
    %87 = vmatpush.msra.mxu0 0.0
    %88 = vmatpush.msra.mxu0 0.0
    %89 = vmatpush.msra.mxu0 0.0
    %90 = vmatpush.msra.mxu0 0.0
    %91 = vmatpush.msra.mxu0 0.0
    %92 = vmatpush.msra.mxu0 0.0
    %93 = vmatpush.msra.mxu0 0.0
    %v94 = vand.u32 %v64, 4294901760
    %95 = vmatpush.msra.mxu0 %v94
    %v96 = vand.u32 %v63, 4294901760
    %97 = vmatpush.msra.mxu0 %v96
    %v98 = vand.u32 %v62, 4294901760
    %99 = vmatpush.msra.mxu0 %v98
    %v100 = vand.u32 %v61, 4294901760
    %101 = vmatpush.msra.mxu0 %v100
    %v102 = vand.u32 %v60, 4294901760
    %103 = vmatpush.msra.mxu0 %v102
    %v104 = vand.u32 %v59, 4294901760
    %105 = vmatpush.msra.mxu0 %v104
    %v106 = vand.u32 %v58, 4294901760
    %107 = vmatpush.msra.mxu0 %v106
    %v108 = vand.u32 %v57, 4294901760
    %109 = vmatpush.msra.mxu0 %v108
    %v110 = vand.u32 %v81, 4294901760
    %v111 = vsub.f32 %v81, %v110
    %v112 = vand.u32 %v111, 4294901760
    %v113 = vsub.f32 %v111, %v112
    %v114 = vand.u32 %v113, 4294901760
    %115 = vmatmul.f32.gmra.mxu0 %v114
    %v116 = vpop.f32.mrf.mxu0
    %v117 = vadd.f32 0.0, %v116
    %v118 = vand.u32 %v84, 4294901760
    %v119 = vsub.f32 %v84, %v118
    %v120 = vand.u32 %v119, 4294901760
    %v121 = vsub.f32 %v119, %v120
    %v122 = vand.u32 %v121, 4294901760
    %123 = vmatmul.f32.gmra.mxu0 %v122
    %v124 = vpop.f32.mrf.mxu0
    %v125 = vadd.f32 0.0, %v124
    %126 = vdwg.mxu0
    %127 = vmatpush.msra.mxu0 0.0
    %128 = vmatpush.msra.mxu0 0.0
    %129 = vmatpush.msra.mxu0 0.0
    %130 = vmatpush.msra.mxu0 0.0
    %131 = vmatpush.msra.mxu0 0.0
    %132 = vmatpush.msra.mxu0 0.0
    %133 = vmatpush.msra.mxu0 0.0
    %134 = vmatpush.msra.mxu0 0.0
    %v135 = vand.u32 %v64, 4294901760
    %v136 = vsub.f32 %v64, %v135
    %v137 = vand.u32 %v136, 4294901760
    %v138 = vsub.f32 %v136, %v137
    %v139 = vand.u32 %v138, 4294901760
    %140 = vmatpush.msra.mxu0 %v139
    %v141 = vand.u32 %v63, 4294901760
    %v142 = vsub.f32 %v63, %v141
    %v143 = vand.u32 %v142, 4294901760
    %v144 = vsub.f32 %v142, %v143
    %v145 = vand.u32 %v144, 4294901760
    %146 = vmatpush.msra.mxu0 %v145
    %v147 = vand.u32 %v62, 4294901760
    %v148 = vsub.f32 %v62, %v147
    %v149 = vand.u32 %v148, 4294901760
    %v150 = vsub.f32 %v148, %v149
    %v151 = vand.u32 %v150, 4294901760
    %152 = vmatpush.msra.mxu0 %v151
    %v153 = vand.u32 %v61, 4294901760
    %v154 = vsub.f32 %v61, %v153
    %v155 = vand.u32 %v154, 4294901760
    %v156 = vsub.f32 %v154, %v155
    %v157 = vand.u32 %v156, 4294901760
    %158 = vmatpush.msra.mxu0 %v157
    %v159 = vand.u32 %v60, 4294901760
    %v160 = vsub.f32 %v60, %v159
    %v161 = vand.u32 %v160, 4294901760
    %v162 = vsub.f32 %v160, %v161
    %v163 = vand.u32 %v162, 4294901760
    %164 = vmatpush.msra.mxu0 %v163
    %v165 = vand.u32 %v59, 4294901760
    %v166 = vsub.f32 %v59, %v165
    %v167 = vand.u32 %v166, 4294901760
    %v168 = vsub.f32 %v166, %v167
    %v169 = vand.u32 %v168, 4294901760
    %170 = vmatpush.msra.mxu0 %v169
    %v171 = vand.u32 %v58, 4294901760
    %v172 = vsub.f32 %v58, %v171
    %v173 = vand.u32 %v172, 4294901760
    %v174 = vsub.f32 %v172, %v173
    %v175 = vand.u32 %v174, 4294901760
    %176 = vmatpush.msra.mxu0 %v175
    %v177 = vand.u32 %v57, 4294901760
    %v178 = vsub.f32 %v57, %v177
    %v179 = vand.u32 %v178, 4294901760
    %v180 = vsub.f32 %v178, %v179
    %v181 = vand.u32 %v180, 4294901760
    %182 = vmatpush.msra.mxu0 %v181
    %v183 = vand.u32 %v81, 4294901760
    %184 = vmatmul.f32.gmra.mxu0 %v183
    %v185 = vpop.f32.mrf.mxu0
    %v186 = vadd.f32 %v117, %v185
    %v187 = vand.u32 %v84, 4294901760
    %188 = vmatmul.f32.gmra.mxu0 %v187
    %v189 = vpop.f32.mrf.mxu0
    %v190 = vadd.f32 %v125, %v189
    %191 = vdwg.mxu0
    %192 = vmatpush.msra.mxu0 0.0
    %193 = vmatpush.msra.mxu0 0.0
    %194 = vmatpush.msra.mxu0 0.0
    %195 = vmatpush.msra.mxu0 0.0
    %196 = vmatpush.msra.mxu0 0.0
    %197 = vmatpush.msra.mxu0 0.0
    %198 = vmatpush.msra.mxu0 0.0
    %199 = vmatpush.msra.mxu0 0.0
    %v200 = vand.u32 %v64, 4294901760
    %v201 = vsub.f32 %v64, %v200
    %202 = vmatpush.msra.mxu0 %v201
    %v203 = vand.u32 %v63, 4294901760
    %v204 = vsub.f32 %v63, %v203
    %205 = vmatpush.msra.mxu0 %v204
    %v206 = vand.u32 %v62, 4294901760
    %v207 = vsub.f32 %v62, %v206
    %208 = vmatpush.msra.mxu0 %v207
    %v209 = vand.u32 %v61, 4294901760
    %v210 = vsub.f32 %v61, %v209
    %211 = vmatpush.msra.mxu0 %v210
    %v212 = vand.u32 %v60, 4294901760
    %v213 = vsub.f32 %v60, %v212
    %214 = vmatpush.msra.mxu0 %v213
    %v215 = vand.u32 %v59, 4294901760
    %v216 = vsub.f32 %v59, %v215
    %217 = vmatpush.msra.mxu0 %v216
    %v218 = vand.u32 %v58, 4294901760
    %v219 = vsub.f32 %v58, %v218
    %220 = vmatpush.msra.mxu0 %v219
    %v221 = vand.u32 %v57, 4294901760
    %v222 = vsub.f32 %v57, %v221
    %223 = vmatpush.msra.mxu0 %v222
    %v224 = vand.u32 %v81, 4294901760
    %v225 = vsub.f32 %v81, %v224
    %226 = vmatmul.f32.gmra.mxu0 %v225
    %v227 = vpop.f32.mrf.mxu0
    %v228 = vadd.f32 %v186, %v227
    %v229 = vand.u32 %v84, 4294901760
    %v230 = vsub.f32 %v84, %v229
    %231 = vmatmul.f32.gmra.mxu0 %v230
    %v232 = vpop.f32.mrf.mxu0
    %v233 = vadd.f32 %v190, %v232
    %234 = vdwg.mxu0
    %235 = vmatpush.msra.mxu0 0.0
    %236 = vmatpush.msra.mxu0 0.0
    %237 = vmatpush.msra.mxu0 0.0
    %238 = vmatpush.msra.mxu0 0.0
    %239 = vmatpush.msra.mxu0 0.0
    %240 = vmatpush.msra.mxu0 0.0
    %241 = vmatpush.msra.mxu0 0.0
    %242 = vmatpush.msra.mxu0 0.0
    %v243 = vand.u32 %v64, 4294901760
    %244 = vmatpush.msra.mxu0 %v243
    %v245 = vand.u32 %v63, 4294901760
    %246 = vmatpush.msra.mxu0 %v245
    %v247 = vand.u32 %v62, 4294901760
    %248 = vmatpush.msra.mxu0 %v247
    %v249 = vand.u32 %v61, 4294901760
    %250 = vmatpush.msra.mxu0 %v249
    %v251 = vand.u32 %v60, 4294901760
    %252 = vmatpush.msra.mxu0 %v251
    %v253 = vand.u32 %v59, 4294901760
    %254 = vmatpush.msra.mxu0 %v253
    %v255 = vand.u32 %v58, 4294901760
    %256 = vmatpush.msra.mxu0 %v255
    %v257 = vand.u32 %v57, 4294901760
    %258 = vmatpush.msra.mxu0 %v257
    %v259 = vand.u32 %v81, 4294901760
    %v260 = vsub.f32 %v81, %v259
    %v261 = vand.u32 %v260, 4294901760
    %262 = vmatmul.f32.gmra.mxu0 %v261
    %v263 = vpop.f32.mrf.mxu0
    %v264 = vadd.f32 %v228, %v263
    %v265 = vand.u32 %v84, 4294901760
    %v266 = vsub.f32 %v84, %v265
    %v267 = vand.u32 %v266, 4294901760
    %268 = vmatmul.f32.gmra.mxu0 %v267
    %v269 = vpop.f32.mrf.mxu0
    %v270 = vadd.f32 %v233, %v269
    %271 = vdwg.mxu0
    %272 = vmatpush.msra.mxu0 0.0
    %273 = vmatpush.msra.mxu0 0.0
    %274 = vmatpush.msra.mxu0 0.0
    %275 = vmatpush.msra.mxu0 0.0
    %276 = vmatpush.msra.mxu0 0.0
    %277 = vmatpush.msra.mxu0 0.0
    %278 = vmatpush.msra.mxu0 0.0
    %279 = vmatpush.msra.mxu0 0.0
    %v280 = vand.u32 %v64, 4294901760
    %v281 = vsub.f32 %v64, %v280
    %v282 = vand.u32 %v281, 4294901760
    %283 = vmatpush.msra.mxu0 %v282
    %v284 = vand.u32 %v63, 4294901760
    %v285 = vsub.f32 %v63, %v284
    %v286 = vand.u32 %v285, 4294901760
    %287 = vmatpush.msra.mxu0 %v286
    %v288 = vand.u32 %v62, 4294901760
    %v289 = vsub.f32 %v62, %v288
    %v290 = vand.u32 %v289, 4294901760
    %291 = vmatpush.msra.mxu0 %v290
    %v292 = vand.u32 %v61, 4294901760
    %v293 = vsub.f32 %v61, %v292
    %v294 = vand.u32 %v293, 4294901760
    %295 = vmatpush.msra.mxu0 %v294
    %v296 = vand.u32 %v60, 4294901760
    %v297 = vsub.f32 %v60, %v296
    %v298 = vand.u32 %v297, 4294901760
    %299 = vmatpush.msra.mxu0 %v298
    %v300 = vand.u32 %v59, 4294901760
    %v301 = vsub.f32 %v59, %v300
    %v302 = vand.u32 %v301, 4294901760
    %303 = vmatpush.msra.mxu0 %v302
    %v304 = vand.u32 %v58, 4294901760
    %v305 = vsub.f32 %v58, %v304
    %v306 = vand.u32 %v305, 4294901760
    %307 = vmatpush.msra.mxu0 %v306
    %v308 = vand.u32 %v57, 4294901760
    %v309 = vsub.f32 %v57, %v308
    %v310 = vand.u32 %v309, 4294901760
    %311 = vmatpush.msra.mxu0 %v310
    %v312 = vand.u32 %v81, 4294901760
    %313 = vmatmul.f32.gmra.mxu0 %v312
    %v314 = vpop.f32.mrf.mxu0
    %v315 = vadd.f32 %v264, %v314
    %v316 = vand.u32 %v84, 4294901760
    %317 = vmatmul.f32.gmra.mxu0 %v316
    %v318 = vpop.f32.mrf.mxu0
    %v319 = vadd.f32 %v270, %v318
    %320 = vdwg.mxu0
    %321 = vmatpush.msra.mxu0 0.0
    %322 = vmatpush.msra.mxu0 0.0
    %323 = vmatpush.msra.mxu0 0.0
    %324 = vmatpush.msra.mxu0 0.0
    %325 = vmatpush.msra.mxu0 0.0
    %326 = vmatpush.msra.mxu0 0.0
    %327 = vmatpush.msra.mxu0 0.0
    %328 = vmatpush.msra.mxu0 0.0
    %v329 = vand.u32 %v64, 4294901760
    %330 = vmatpush.msra.mxu0 %v329
    %v331 = vand.u32 %v63, 4294901760
    %332 = vmatpush.msra.mxu0 %v331
    %v333 = vand.u32 %v62, 4294901760
    %334 = vmatpush.msra.mxu0 %v333
    %v335 = vand.u32 %v61, 4294901760
    %336 = vmatpush.msra.mxu0 %v335
    %v337 = vand.u32 %v60, 4294901760
    %338 = vmatpush.msra.mxu0 %v337
    %v339 = vand.u32 %v59, 4294901760
    %340 = vmatpush.msra.mxu0 %v339
    %v341 = vand.u32 %v58, 4294901760
    %342 = vmatpush.msra.mxu0 %v341
    %v343 = vand.u32 %v57, 4294901760
    %344 = vmatpush.msra.mxu0 %v343
    %v345 = vand.u32 %v81, 4294901760
    %346 = vmatmul.f32.gmra.mxu0 %v345
    %v347 = vpop.f32.mrf.mxu0
    %v348 = vadd.f32 %v315, %v347
    %v349 = vand.u32 %v84, 4294901760
    %350 = vmatmul.f32.gmra.mxu0 %v349
    %v351 = vpop.f32.mrf.mxu0
    %v352 = vadd.f32 %v319, %v351
    %353 = vdwg.mxu0
    %354 = vst [vmem:[#allocation7] sm:$0xff] %v348
    %355 = vst [vmem:[#allocation7 + $0x8] sm:$0xff] %v352
    %v356 = vld [vmem:[#allocation5] sm:$0xff]
    %v357 = vld [vmem:[#allocation5 + $0x8] sm:$0xff]
    %v358 = vld [vmem:[#allocation5 + $0x10] sm:$0xff]
    %v359 = vld [vmem:[#allocation5 + $0x18] sm:$0xff]
    %v360 = vld [vmem:[#allocation5 + $0x20] sm:$0xff]
    %v361 = vld [vmem:[#allocation5 + $0x28] sm:$0xff]
    %v362 = vld [vmem:[#allocation5 + $0x30] sm:$0xff]
    %v363 = vld [vmem:[#allocation5 + $0x38] sm:$0xff]
    %v364 = vld [vmem:[#allocation5 + $0x40] sm:$0xff]
    %v365 = vld [vmem:[#allocation5 + $0x48] sm:$0xff]
    %v366 = vld [vmem:[#allocation5 + $0x50] sm:$0xff]
    %v367 = vld [vmem:[#allocation5 + $0x58] sm:$0xff]
    %368 = vset.pattern.permute.xlu0 0
    %369 = vperm.xlu0 %368, %v55
    %v370 = vpop.permute.xlu0 %369
    %371 = vset.pattern.permute.xlu0 0
    %372 = vperm.xlu0 %371, %v56
    %v373 = vpop.permute.xlu0 %372
    %vm374 = vcmp.eq.s32.totalorder %v66, %v370
    %vm375 = vcmp.eq.s32.totalorder %v66, %v373
    %v376 = vsel %vm374, 1, 0
    %v377 = vsel %vm375, 1, 0
    %v378 = vcvt.s32.f32 %v376
    %v379 = vcvt.s32.f32 %v377
    %vm380 = vcmask 785408
    %v382 = vsel %vm380, %v378, 0
    %v385 = vsel %vm380, %v379, 0
    %387 = vmatpush.msra.mxu0 0.0
    %388 = vmatpush.msra.mxu0 0.0
    %389 = vmatpush.msra.mxu0 0.0
    %390 = vmatpush.msra.mxu0 0.0
    %v391 = vand.u32 %v367, 4294901760
    %392 = vmatpush.msra.mxu0 %v391
    %v393 = vand.u32 %v366, 4294901760
    %394 = vmatpush.msra.mxu0 %v393
    %v395 = vand.u32 %v365, 4294901760
    %396 = vmatpush.msra.mxu0 %v395
    %v397 = vand.u32 %v364, 4294901760
    %398 = vmatpush.msra.mxu0 %v397
    %v399 = vand.u32 %v363, 4294901760
    %400 = vmatpush.msra.mxu0 %v399
    %v401 = vand.u32 %v362, 4294901760
    %402 = vmatpush.msra.mxu0 %v401
    %v403 = vand.u32 %v361, 4294901760
    %404 = vmatpush.msra.mxu0 %v403
    %v405 = vand.u32 %v360, 4294901760
    %406 = vmatpush.msra.mxu0 %v405
    %v407 = vand.u32 %v359, 4294901760
    %408 = vmatpush.msra.mxu0 %v407
    %v409 = vand.u32 %v358, 4294901760
    %410 = vmatpush.msra.mxu0 %v409
    %v411 = vand.u32 %v357, 4294901760
    %412 = vmatpush.msra.mxu0 %v411
    %v413 = vand.u32 %v356, 4294901760
    %414 = vmatpush.msra.mxu0 %v413
    %v415 = vand.u32 %v382, 4294901760
    %v416 = vsub.f32 %v382, %v415
    %v417 = vand.u32 %v416, 4294901760
    %v418 = vsub.f32 %v416, %v417
    %v419 = vand.u32 %v418, 4294901760
    %420 = vmatmul.f32.gmra.mxu0 %v419
    %v421 = vpop.f32.mrf.mxu0
    %v422 = vadd.f32 0.0, %v421
    %v423 = vand.u32 %v385, 4294901760
    %v424 = vsub.f32 %v385, %v423
    %v425 = vand.u32 %v424, 4294901760
    %v426 = vsub.f32 %v424, %v425
    %v427 = vand.u32 %v426, 4294901760
    %428 = vmatmul.f32.gmra.mxu0 %v427
    %v429 = vpop.f32.mrf.mxu0
    %v430 = vadd.f32 0.0, %v429
    %431 = vdwg.mxu0
    %432 = vmatpush.msra.mxu0 0.0
    %433 = vmatpush.msra.mxu0 0.0
    %434 = vmatpush.msra.mxu0 0.0
    %435 = vmatpush.msra.mxu0 0.0
    %v436 = vand.u32 %v367, 4294901760
    %v437 = vsub.f32 %v367, %v436
    %v438 = vand.u32 %v437, 4294901760
    %v439 = vsub.f32 %v437, %v438
    %v440 = vand.u32 %v439, 4294901760
    %441 = vmatpush.msra.mxu0 %v440
    %v442 = vand.u32 %v366, 4294901760
    %v443 = vsub.f32 %v366, %v442
    %v444 = vand.u32 %v443, 4294901760
    %v445 = vsub.f32 %v443, %v444
    %v446 = vand.u32 %v445, 4294901760
    %447 = vmatpush.msra.mxu0 %v446
    %v448 = vand.u32 %v365, 4294901760
    %v449 = vsub.f32 %v365, %v448
    %v450 = vand.u32 %v449, 4294901760
    %v451 = vsub.f32 %v449, %v450
    %v452 = vand.u32 %v451, 4294901760
    %453 = vmatpush.msra.mxu0 %v452
    %v454 = vand.u32 %v364, 4294901760
    %v455 = vsub.f32 %v364, %v454
    %v456 = vand.u32 %v455, 4294901760
    %v457 = vsub.f32 %v455, %v456
    %v458 = vand.u32 %v457, 4294901760
    %459 = vmatpush.msra.mxu0 %v458
    %v460 = vand.u32 %v363, 4294901760
    %v461 = vsub.f32 %v363, %v460
    %v462 = vand.u32 %v461, 4294901760
    %v463 = vsub.f32 %v461, %v462
    %v464 = vand.u32 %v463, 4294901760
    %465 = vmatpush.msra.mxu0 %v464
    %v466 = vand.u32 %v362, 4294901760
    %v467 = vsub.f32 %v362, %v466
    %v468 = vand.u32 %v467, 4294901760
    %v469 = vsub.f32 %v467, %v468
    %v470 = vand.u32 %v469, 4294901760
    %471 = vmatpush.msra.mxu0 %v470
    %v472 = vand.u32 %v361, 4294901760
    %v473 = vsub.f32 %v361, %v472
    %v474 = vand.u32 %v473, 4294901760
    %v475 = vsub.f32 %v473, %v474
    %v476 = vand.u32 %v475, 4294901760
    %477 = vmatpush.msra.mxu0 %v476
    %v478 = vand.u32 %v360, 4294901760
    %v479 = vsub.f32 %v360, %v478
    %v480 = vand.u32 %v479, 4294901760
    %v481 = vsub.f32 %v479, %v480
    %v482 = vand.u32 %v481, 4294901760
    %483 = vmatpush.msra.mxu0 %v482
    %v484 = vand.u32 %v359, 4294901760
    %v485 = vsub.f32 %v359, %v484
    %v486 = vand.u32 %v485, 4294901760
    %v487 = vsub.f32 %v485, %v486
    %v488 = vand.u32 %v487, 4294901760
    %489 = vmatpush.msra.mxu0 %v488
    %v490 = vand.u32 %v358, 4294901760
    %v491 = vsub.f32 %v358, %v490
    %v492 = vand.u32 %v491, 4294901760
    %v493 = vsub.f32 %v491, %v492
    %v494 = vand.u32 %v493, 4294901760
    %495 = vmatpush.msra.mxu0 %v494
    %v496 = vand.u32 %v357, 4294901760
    %v497 = vsub.f32 %v357, %v496
    %v498 = vand.u32 %v497, 4294901760
    %v499 = vsub.f32 %v497, %v498
    %v500 = vand.u32 %v499, 4294901760
    %501 = vmatpush.msra.mxu0 %v500
    %v502 = vand.u32 %v356, 4294901760
    %v503 = vsub.f32 %v356, %v502
    %v504 = vand.u32 %v503, 4294901760
    %v505 = vsub.f32 %v503, %v504
    %v506 = vand.u32 %v505, 4294901760
    %507 = vmatpush.msra.mxu0 %v506
    %v508 = vand.u32 %v382, 4294901760
    %509 = vmatmul.f32.gmra.mxu0 %v508
    %v510 = vpop.f32.mrf.mxu0
    %v511 = vadd.f32 %v422, %v510
    %v512 = vand.u32 %v385, 4294901760
    %513 = vmatmul.f32.gmra.mxu0 %v512
    %v514 = vpop.f32.mrf.mxu0
    %v515 = vadd.f32 %v430, %v514
    %516 = vdwg.mxu0
    %517 = vmatpush.msra.mxu0 0.0
    %518 = vmatpush.msra.mxu0 0.0
    %519 = vmatpush.msra.mxu0 0.0
    %520 = vmatpush.msra.mxu0 0.0
    %v521 = vand.u32 %v367, 4294901760
    %v522 = vsub.f32 %v367, %v521
    %523 = vmatpush.msra.mxu0 %v522
    %v524 = vand.u32 %v366, 4294901760
    %v525 = vsub.f32 %v366, %v524
    %526 = vmatpush.msra.mxu0 %v525
    %v527 = vand.u32 %v365, 4294901760
    %v528 = vsub.f32 %v365, %v527
    %529 = vmatpush.msra.mxu0 %v528
    %v530 = vand.u32 %v364, 4294901760
    %v531 = vsub.f32 %v364, %v530
    %532 = vmatpush.msra.mxu0 %v531
    %v533 = vand.u32 %v363, 4294901760
    %v534 = vsub.f32 %v363, %v533
    %535 = vmatpush.msra.mxu0 %v534
    %v536 = vand.u32 %v362, 4294901760
    %v537 = vsub.f32 %v362, %v536
    %538 = vmatpush.msra.mxu0 %v537
    %v539 = vand.u32 %v361, 4294901760
    %v540 = vsub.f32 %v361, %v539
    %541 = vmatpush.msra.mxu0 %v540
    %v542 = vand.u32 %v360, 4294901760
    %v543 = vsub.f32 %v360, %v542
    %544 = vmatpush.msra.mxu0 %v543
    %v545 = vand.u32 %v359, 4294901760
    %v546 = vsub.f32 %v359, %v545
    %547 = vmatpush.msra.mxu0 %v546
    %v548 = vand.u32 %v358, 4294901760
    %v549 = vsub.f32 %v358, %v548
    %550 = vmatpush.msra.mxu0 %v549
    %v551 = vand.u32 %v357, 4294901760
    %v552 = vsub.f32 %v357, %v551
    %553 = vmatpush.msra.mxu0 %v552
    %v554 = vand.u32 %v356, 4294901760
    %v555 = vsub.f32 %v356, %v554
    %556 = vmatpush.msra.mxu0 %v555
    %v557 = vand.u32 %v382, 4294901760
    %v558 = vsub.f32 %v382, %v557
    %559 = vmatmul.f32.gmra.mxu0 %v558
    %v560 = vpop.f32.mrf.mxu0
    %v561 = vadd.f32 %v511, %v560
    %v562 = vand.u32 %v385, 4294901760
    %v563 = vsub.f32 %v385, %v562
    %564 = vmatmul.f32.gmra.mxu0 %v563
    %v565 = vpop.f32.mrf.mxu0
    %v566 = vadd.f32 %v515, %v565
    %567 = vdwg.mxu0
    %568 = vmatpush.msra.mxu0 0.0
    %569 = vmatpush.msra.mxu0 0.0
    %570 = vmatpush.msra.mxu0 0.0
    %571 = vmatpush.msra.mxu0 0.0
    %v572 = vand.u32 %v367, 4294901760
    %573 = vmatpush.msra.mxu0 %v572
    %v574 = vand.u32 %v366, 4294901760
    %575 = vmatpush.msra.mxu0 %v574
    %v576 = vand.u32 %v365, 4294901760
    %577 = vmatpush.msra.mxu0 %v576
    %v578 = vand.u32 %v364, 4294901760
    %579 = vmatpush.msra.mxu0 %v578
    %v580 = vand.u32 %v363, 4294901760
    %581 = vmatpush.msra.mxu0 %v580
    %v582 = vand.u32 %v362, 4294901760
    %583 = vmatpush.msra.mxu0 %v582
    %v584 = vand.u32 %v361, 4294901760
    %585 = vmatpush.msra.mxu0 %v584
    %v586 = vand.u32 %v360, 4294901760
    %587 = vmatpush.msra.mxu0 %v586
    %v588 = vand.u32 %v359, 4294901760
    %589 = vmatpush.msra.mxu0 %v588
    %v590 = vand.u32 %v358, 4294901760
    %591 = vmatpush.msra.mxu0 %v590
    %v592 = vand.u32 %v357, 4294901760
    %593 = vmatpush.msra.mxu0 %v592
    %v594 = vand.u32 %v356, 4294901760
    %595 = vmatpush.msra.mxu0 %v594
    %v596 = vand.u32 %v382, 4294901760
    %v597 = vsub.f32 %v382, %v596
    %v598 = vand.u32 %v597, 4294901760
    %599 = vmatmul.f32.gmra.mxu0 %v598
    %v600 = vpop.f32.mrf.mxu0
    %v601 = vadd.f32 %v561, %v600
    %v602 = vand.u32 %v385, 4294901760
    %v603 = vsub.f32 %v385, %v602
    %v604 = vand.u32 %v603, 4294901760
    %605 = vmatmul.f32.gmra.mxu0 %v604
    %v606 = vpop.f32.mrf.mxu0
    %v607 = vadd.f32 %v566, %v606
    %608 = vdwg.mxu0
    %609 = vmatpush.msra.mxu0 0.0
    %610 = vmatpush.msra.mxu0 0.0
    %611 = vmatpush.msra.mxu0 0.0
    %612 = vmatpush.msra.mxu0 0.0
    %v613 = vand.u32 %v367, 4294901760
    %v614 = vsub.f32 %v367, %v613
    %v615 = vand.u32 %v614, 4294901760
    %616 = vmatpush.msra.mxu0 %v615
    %v617 = vand.u32 %v366, 4294901760
    %v618 = vsub.f32 %v366, %v617
    %v619 = vand.u32 %v618, 4294901760
    %620 = vmatpush.msra.mxu0 %v619
    %v621 = vand.u32 %v365, 4294901760
    %v622 = vsub.f32 %v365, %v621
    %v623 = vand.u32 %v622, 4294901760
    %624 = vmatpush.msra.mxu0 %v623
    %v625 = vand.u32 %v364, 4294901760
    %v626 = vsub.f32 %v364, %v625
    %v627 = vand.u32 %v626, 4294901760
    %628 = vmatpush.msra.mxu0 %v627
    %v629 = vand.u32 %v363, 4294901760
    %v630 = vsub.f32 %v363, %v629
    %v631 = vand.u32 %v630, 4294901760
    %632 = vmatpush.msra.mxu0 %v631
    %v633 = vand.u32 %v362, 4294901760
    %v634 = vsub.f32 %v362, %v633
    %v635 = vand.u32 %v634, 4294901760
    %636 = vmatpush.msra.mxu0 %v635
    %v637 = vand.u32 %v361, 4294901760
    %v638 = vsub.f32 %v361, %v637
    %v639 = vand.u32 %v638, 4294901760
    %640 = vmatpush.msra.mxu0 %v639
    %v641 = vand.u32 %v360, 4294901760
    %v642 = vsub.f32 %v360, %v641
    %v643 = vand.u32 %v642, 4294901760
    %644 = vmatpush.msra.mxu0 %v643
    %v645 = vand.u32 %v359, 4294901760
    %v646 = vsub.f32 %v359, %v645
    %v647 = vand.u32 %v646, 4294901760
    %648 = vmatpush.msra.mxu0 %v647
    %v649 = vand.u32 %v358, 4294901760
    %v650 = vsub.f32 %v358, %v649
    %v651 = vand.u32 %v650, 4294901760
    %652 = vmatpush.msra.mxu0 %v651
    %v653 = vand.u32 %v357, 4294901760
    %v654 = vsub.f32 %v357, %v653
    %v655 = vand.u32 %v654, 4294901760
    %656 = vmatpush.msra.mxu0 %v655
    %v657 = vand.u32 %v356, 4294901760
    %v658 = vsub.f32 %v356, %v657
    %v659 = vand.u32 %v658, 4294901760
    %660 = vmatpush.msra.mxu0 %v659
    %v661 = vand.u32 %v382, 4294901760
    %662 = vmatmul.f32.gmra.mxu0 %v661
    %v663 = vpop.f32.mrf.mxu0
    %v664 = vadd.f32 %v601, %v663
    %v665 = vand.u32 %v385, 4294901760
    %666 = vmatmul.f32.gmra.mxu0 %v665
    %v667 = vpop.f32.mrf.mxu0
    %v668 = vadd.f32 %v607, %v667
    %669 = vdwg.mxu0
    %670 = vmatpush.msra.mxu0 0.0
    %671 = vmatpush.msra.mxu0 0.0
    %672 = vmatpush.msra.mxu0 0.0
    %673 = vmatpush.msra.mxu0 0.0
    %v674 = vand.u32 %v367, 4294901760
    %675 = vmatpush.msra.mxu0 %v674
    %v676 = vand.u32 %v366, 4294901760
    %677 = vmatpush.msra.mxu0 %v676
    %v678 = vand.u32 %v365, 4294901760
    %679 = vmatpush.msra.mxu0 %v678
    %v680 = vand.u32 %v364, 4294901760
    %681 = vmatpush.msra.mxu0 %v680
    %v682 = vand.u32 %v363, 4294901760
    %683 = vmatpush.msra.mxu0 %v682
    %v684 = vand.u32 %v362, 4294901760
    %685 = vmatpush.msra.mxu0 %v684
    %v686 = vand.u32 %v361, 4294901760
    %687 = vmatpush.msra.mxu0 %v686
    %v688 = vand.u32 %v360, 4294901760
    %689 = vmatpush.msra.mxu0 %v688
    %v690 = vand.u32 %v359, 4294901760
    %691 = vmatpush.msra.mxu0 %v690
    %v692 = vand.u32 %v358, 4294901760
    %693 = vmatpush.msra.mxu0 %v692
    %v694 = vand.u32 %v357, 4294901760
    %695 = vmatpush.msra.mxu0 %v694
    %v696 = vand.u32 %v356, 4294901760
    %697 = vmatpush.msra.mxu0 %v696
    %v698 = vand.u32 %v382, 4294901760
    %699 = vmatmul.f32.gmra.mxu0 %v698
    %v700 = vpop.f32.mrf.mxu0
    %v701 = vadd.f32 %v664, %v700
    %v702 = vand.u32 %v385, 4294901760
    %703 = vmatmul.f32.gmra.mxu0 %v702
    %v704 = vpop.f32.mrf.mxu0
    %v705 = vadd.f32 %v668, %v704
    %706 = vdwg.mxu0
    %707 = vst [vmem:[#allocation8] sm:$0xff] %v701
    %708 = vst [vmem:[#allocation8 + $0x8] sm:$0xff] %v705
    // Predicated region
    $region26: #{tpu_custom_call.1} parent=1 // pred_check
      _
    $region27: #{tpu_custom_call.1} parent=1 // pred_check_branch
      %710 = sbr.rel (0) target = $region29
    $region28: #{tpu_custom_call.1} parent=1 // pred_region
      %712 = vsyncadd [#allocation4], 0
      %s713 = sshll.u32 [#allocation7], 4
      %s714 = int_to_ptr.vmem [resolvable:$true] %s713
      %s715 = sshll.u32 %s4, 4
      %s716 = int_to_ptr.hbm [resolvable:$true] %s715
      %721 = dma.vmem_to_hbm [thread:$0]  %s714, 256, %s716, [#allocation4], 128, 128, 8
    $region29: #{tpu_custom_call.1} parent=1 // pred_fallthru
      _
    // Predicated region
    $region30: #{tpu_custom_call.1} parent=1 // pred_check
      _
    $region31: #{tpu_custom_call.1} parent=1 // pred_check_branch
      %723 = sbr.rel (0) target = $region33
    $region32: #{tpu_custom_call.1} parent=1 // pred_region
      %725 = vsyncadd [#allocation9], 0
      %s726 = sshll.u32 [#allocation8], 4
      %s727 = int_to_ptr.vmem [resolvable:$true] %s726
      %s728 = sshll.u32 %s5, 4
      %s729 = int_to_ptr.hbm [resolvable:$true] %s728
      %734 = dma.vmem_to_hbm [thread:$0]  %s727, 256, %s729, [#allocation9], 128, 128, 8
    $region33: #{tpu_custom_call.1} parent=1 // pred_fallthru
      _
    // Predicated region
    $region34: #{tpu_custom_call.1} parent=1 // pred_check
      _
    $region35: #{tpu_custom_call.1} parent=1 // pred_check_branch
      %736 = sbr.rel (0) target = $region37
    $region36: #{tpu_custom_call.1} parent=1 // pred_region
      %738 = dma.done [#allocation4], 256
    $region37: #{tpu_custom_call.1} parent=1 // pred_fallthru
      _
    // Predicated region
    $region38: #{tpu_custom_call.1} parent=1 // pred_check
      _
    $region39: #{tpu_custom_call.1} parent=1 // pred_check_branch
      %740 = sbr.rel (0) target = $region41
    $region40: #{tpu_custom_call.1} parent=1 // pred_region
      %742 = dma.done [#allocation9], 256
    $region41: #{tpu_custom_call.1} parent=1 // pred_fallthru
      _
    %743 = vsyncpa [#allocation3], 1
    %744 = vsyncpa [#allocation6], 1
    %745 = vsyncpa [#allocation4], 1
    %746 = vsyncpa [#allocation9], 1

</llo_original>
